<compile_context>
chip_gen: v5e
topology: v5e:2x2
jax: 0.10.0
libtpu: 0.0.40
codegen_flags: <defaults>
</compile_context>

<pallas_src>
import functools
import math

import jax
import jax.numpy as jnp
from jax import lax
from jax.experimental import pallas as pl
from jax.experimental.pallas import tpu as pltpu

COMPUTE_DTYPE = jnp.bfloat16          # MXU operand dtype (accumulation stays f32)


def _tpu_generation():
    try:
        kind = jax.devices()[0].device_kind.lower()
    except Exception:
        return 0
    for gen in (7, 6, 5, 4, 3, 2):
        if f"v{gen}" in kind:
            return gen
    return 0


def _default_vmem_limit_bytes():
    """~75% of physical per-core VMEM (96 MiB on v5e/v6e, 48 MiB on v7x)."""
    try:
        cap = int(pltpu.get_tpu_info().vmem_capacity_bytes)
    except Exception:
        cap = 64 * 1024 * 1024        # conservative (v7x-sized) fallback
    return int(min(cap * 3 // 4, 112 * 1024 * 1024))


VMEM_LIMIT = _default_vmem_limit_bytes()
# bf16 exp rides the bf16 EUP path on v6e/v7x; v5e and older keep f32 (no bf16 EUP).
EXP_DTYPE = jnp.bfloat16 if _tpu_generation() >= 6 else jnp.float32


def _pick_tile(dim, target, align):
    """Largest multiple of `align` (falling back to 8) dividing `dim` and <= `target`;
    otherwise the full dim (full-extent blocks are always legal)."""
    if dim <= target:
        return dim
    for a in (align, 8):
        t = (target // a) * a
        while t >= a:
            if dim % t == 0:
                return t
            t -= a
    return dim


# ----------------------------------------------------------------------------
# Tiled linear:  y = x @ Wt + b     (Wt already stored transposed: (C_in, C_out))
# ----------------------------------------------------------------------------
def _linear_kernel(x_ref, wt_ref, b_ref, o_ref, acc_ref):
    @pl.when(pl.program_id(2) == 0)
    def _init():
        acc_ref[...] = jnp.zeros_like(acc_ref)

    acc_ref[...] += jnp.dot(
        x_ref[...].astype(COMPUTE_DTYPE),
        wt_ref[...].astype(COMPUTE_DTYPE),
        preferred_element_type=jnp.float32,
    )

    @pl.when(pl.program_id(2) == pl.num_programs(2) - 1)
    def _finalize():
        # Bias added in the f32 accumulator, single cast to the output dtype.
        o_ref[...] = (acc_ref[...] + b_ref[...]).astype(o_ref.dtype)


def _linear(x2d, wt, b, out_dtype):
    M, K = x2d.shape
    K2, N = wt.shape
    assert K == K2
    tm = _pick_tile(M, 512, 16)     # 16-row aligned (bf16 packs 2 rows / sublane)
    tn = _pick_tile(N, 256, 128)    # 256 matches v6e/v7x MXU width, 2x128 on v5e
    tk = _pick_tile(K, 1024, 128)
    b2 = b.reshape(1, N).astype(jnp.float32)

    cost = pl.CostEstimate(
        flops=2 * M * N * K,
        transcendentals=0,
        bytes_accessed=(M * K * x2d.dtype.itemsize + K * N * wt.dtype.itemsize
                        + N * 4 + M * N * jnp.dtype(out_dtype).itemsize),
    )
    return pl.pallas_call(
        _linear_kernel,
        out_shape=jax.ShapeDtypeStruct((M, N), out_dtype),
        grid=(M // tm, N // tn, K // tk),
        in_specs=[
            pl.BlockSpec((tm, tk), lambda i, j, k: (i, k)),
            pl.BlockSpec((tk, tn), lambda i, j, k: (k, j)),
            pl.BlockSpec((1, tn), lambda i, j, k: (0, j)),
        ],
        out_specs=pl.BlockSpec((tm, tn), lambda i, j, k: (i, j)),
        scratch_shapes=[pltpu.VMEM((tm, tn), jnp.float32)],
        compiler_params=pltpu.CompilerParams(
            dimension_semantics=("parallel", "parallel", "arbitrary"),
            vmem_limit_bytes=VMEM_LIMIT,
        ),
        cost_estimate=cost,
    )(x2d, wt, b2)


# ----------------------------------------------------------------------------
# Flash-style multi-head attention with the output projection fused in.
#   q view:  (b, n, c)  bf16, 1/sqrt(c_h) already folded into the Q projection.
#   kv view: (b, n, 2c) bf16 laid out [K | V].
#   Heads are processed by static channel slicing inside the kernel.
# ----------------------------------------------------------------------------
def _attn_kernel(q_ref, kv_ref, wo_ref, bo_ref, o_ref,
                 m_ref, l_ref, acc_ref, *, head, c_h, c, exp_dtype):
    kv_step = pl.program_id(2)

    @pl.when(kv_step == 0)
    def _init():
        m_ref[...] = jnp.full(m_ref.shape, -jnp.inf, dtype=m_ref.dtype)
        l_ref[...] = jnp.zeros(l_ref.shape, dtype=l_ref.dtype)
        acc_ref[...] = jnp.zeros(acc_ref.shape, dtype=acc_ref.dtype)

    for h in range(head):               # static unroll: head h's matmul overlaps h-1's exp
        lo, hi = h * c_h, (h + 1) * c_h
        q = q_ref[0, :, lo:hi]          # (tq,  c_h) bf16
        k = kv_ref[0, :, lo:hi]         # (tkv, c_h) bf16
        v = kv_ref[0, :, c + lo:c + hi]  # (tkv, c_h) bf16
        # QK^T without materializing k.T: contract last dims directly on the MXU.
        s = lax.dot_general(q, k, (((1,), (1,)), ((), ())),
                            preferred_element_type=jnp.float32)          # (tq, tkv)
        m_prev = m_ref[:, h:h + 1]                                        # (tq, 1)
        m_new = jnp.maximum(m_prev, jnp.max(s, axis=-1, keepdims=True))
        alpha = jnp.exp((m_prev - m_new).astype(exp_dtype)).astype(jnp.float32)
        p = jnp.exp((s - m_new).astype(exp_dtype))                        # exp_dtype
        # TODO(synk): dropout(p=0.1) on attention probs omitted (eval-mode identity).
        p_sum = jnp.sum(p.astype(jnp.float32), axis=-1, keepdims=True)
        l_ref[:, h:h + 1] = alpha * l_ref[:, h:h + 1] + p_sum
        acc_ref[:, lo:hi] = alpha * acc_ref[:, lo:hi] + jnp.dot(
            p.astype(COMPUTE_DTYPE), v, preferred_element_type=jnp.float32)
        m_ref[:, h:h + 1] = m_new

    @pl.when(kv_step == pl.num_programs(2) - 1)
    def _finalize():
        for h in range(head):
            lo, hi = h * c_h, (h + 1) * c_h
            acc_ref[:, lo:hi] = acc_ref[:, lo:hi] * pl.reciprocal(
                l_ref[:, h:h + 1], approx=True)
        # Fused output projection: (tq, c) @ (c, c) + b, single lane-dense store.
        o_ref[0] = (jnp.dot(acc_ref[...].astype(COMPUTE_DTYPE), wo_ref[...],
                            preferred_element_type=jnp.float32)
                    + bo_ref[...]).astype(o_ref.dtype)


def _attention(q, kv, wo, bo, head, out_dtype, *, q_channel_block=0, tq=None, tkv=None):
    b, n = q.shape[0], q.shape[1]
    c = wo.shape[0]
    c_h = c // head
    if tq is None:
        tq = _pick_tile(n, 256, 16)
    if tkv is None:
        tkv = _pick_tile(n, 512, 16)
    assert n % tq == 0 and n % tkv == 0

    kernel = functools.partial(_attn_kernel, head=head, c_h=c_h, c=c,
                               exp_dtype=EXP_DTYPE)
    cost = pl.CostEstimate(
        flops=4 * b * n * n * c + 2 * b * n * c * c,
        transcendentals=2 * b * head * n * n,
        bytes_accessed=(q.size * q.dtype.itemsize + kv.size * kv.dtype.itemsize
                        + wo.size * wo.dtype.itemsize + bo.size * 4
                        + b * n * c * jnp.dtype(out_dtype).itemsize),
    )
    return pl.pallas_call(
        kernel,
        out_shape=jax.ShapeDtypeStruct((b, n, c), out_dtype),
        grid=(b, n // tq, n // tkv),
        in_specs=[
            # Q tile: resident across the KV axis (block index independent of k).
            pl.BlockSpec((1, tq, c), lambda i, j, k: (i, j, q_channel_block)),
            # KV tile: streams along the (pipelined) KV axis.
            pl.BlockSpec((1, tkv, 2 * c), lambda i, j, k: (i, k, 0)),
            # Fused output projection weights / bias: constant index -> VMEM resident.
            pl.BlockSpec((c, c), lambda i, j, k: (0, 0)),
            pl.BlockSpec((1, c), lambda i, j, k: (0, 0)),
        ],
        out_specs=pl.BlockSpec((1, tq, c), lambda i, j, k: (i, j, 0)),
        scratch_shapes=[
            pltpu.VMEM((tq, head), jnp.float32),   # running max  (per head column)
            pltpu.VMEM((tq, head), jnp.float32),   # running sum  (per head column)
            pltpu.VMEM((tq, c), jnp.float32),      # un-normalized head outputs (all heads)
        ],
        compiler_params=pltpu.CompilerParams(
            dimension_semantics=("parallel", "parallel", "arbitrary"),
            vmem_limit_bytes=VMEM_LIMIT,
        ),
        cost_estimate=cost,
    )(q, kv, wo, bo)


# ----------------------------------------------------------------------------
# Params + module wrapper
# ----------------------------------------------------------------------------
def init_params(key, d_model):
    """Deterministic synthetic params in PyTorch nn.Linear layout: W (out, in), b (out,)."""
    names = ["query", "key", "value", "out"]
    params = {}
    bound = 1.0 / math.sqrt(d_model)
    for i, name in enumerate(names):
        kw, kb = jax.random.split(jax.random.fold_in(key, i))
        params[name + "_w"] = jax.random.uniform(
            kw, (d_model, d_model), jnp.float32, -bound, bound)
        params[name + "_b"] = jax.random.uniform(
            kb, (d_model,), jnp.float32, -bound, bound)
    return params


def prepare_params(raw, head, compute_dtype=COMPUTE_DTYPE):
    """One-time prep outside the forward: transpose weights (nn.Linear does x @ W^T),
    fuse K/V (and K/V/Q for self-attention) into single projections, fold the 1/sqrt(c_h)
    attention scale into Q, store weights in bf16 (biases stay f32)."""
    d_model = raw["query_w"].shape[0]
    scale = 1.0 / math.sqrt(d_model // head)
    q_wt = raw["query_w"].T * scale
    k_wt = raw["key_w"].T
    v_wt = raw["value_w"].T
    return {
        "q_wt": q_wt.astype(compute_dtype),
        "q_b": raw["query_b"].astype(jnp.float32) * scale,
        "kv_wt": jnp.concatenate([k_wt, v_wt], axis=1).astype(compute_dtype),
        "kv_b": jnp.concatenate([raw["key_b"], raw["value_b"]]).astype(jnp.float32),
        # Self-attention fused projection, ordered [K | V | Q*scale] so the attention
        # kernel can view Q (channel block 2) and KV (channel block 0) in the same array.
        "kvq_wt": jnp.concatenate([k_wt, v_wt, q_wt], axis=1).astype(compute_dtype),
        "kvq_b": jnp.concatenate([raw["key_b"], raw["value_b"],
                                  raw["query_b"] * scale]).astype(jnp.float32),
        "out_wt": raw["out_w"].T.astype(compute_dtype),
        "out_b": raw["out_b"].astype(jnp.float32),
    }


def multi_headed_attention2(prepared, x, y, head, *, self_attention=False,
                            tq=None, tkv=None):
    b, n, c = x.shape
    assert c % head == 0, "d_model must be divisible by head"
    x2d = x.reshape(b * n, c)
    bo = prepared["out_b"].reshape(1, c)

    if self_attention and c % 128 == 0:
        # x is y: one fused (C, 3C) projection; its output feeds the attention kernel
        # directly as both the KV view and the Q view (no slicing copies).
        kvq = _linear(x2d, prepared["kvq_wt"], prepared["kvq_b"], COMPUTE_DTYPE)
        kvq = kvq.reshape(b, n, 3 * c)
        return _attention(kvq, kvq, prepared["out_wt"], bo, head, x.dtype,
                          q_channel_block=2, tq=tq, tkv=tkv)

    y2d = y.reshape(b * n, c)
    q = _linear(x2d, prepared["q_wt"], prepared["q_b"], COMPUTE_DTYPE).reshape(b, n, c)
    kv = _linear(y2d, prepared["kv_wt"], prepared["kv_b"], COMPUTE_DTYPE).reshape(b, n, 2 * c)
    return _attention(q, kv, prepared["out_wt"], bo, head, x.dtype, tq=tq, tkv=tkv)


# ----------------------------------------------------------------------------
# Pure-JAX reference (PyTorch module semantics, eval mode) for correctness check.
# ----------------------------------------------------------------------------
def _reference(raw, x, y, head):
    hp = lax.Precision.HIGHEST
    b, n, c = x.shape
    c_h = c // head

    def lin(name, t):
        return jnp.matmul(t, raw[name + "_w"].T, precision=hp) + raw[name + "_b"]

    def heads(t):
        return t.reshape(b, n, head, c_h).transpose(0, 2, 1, 3)

    q, k, v = heads(lin("query", x)), heads(lin("key", y)), heads(lin("value", y))
    s = jnp.einsum("bhqd,bhkd->bhqk", q, k, precision=hp) / math.sqrt(c_h)
    p = jax.nn.softmax(s, axis=-1)
    att = jnp.einsum("bhqk,bhkd->bhqd", p, v, precision=hp)
    att = att.transpose(0, 2, 1, 3).reshape(b, n, c)
    return lin("out", att)


if __name__ == "__main__":
    # --- primary small-shape cross-attention check (x != y) ---
    b, n, d_model, head = 2, 8, 32, 4
    key = jax.random.PRNGKey(0)
    kx, ky, kp = jax.random.split(key, 3)
    x = jax.random.normal(kx, (b, n, d_model), jnp.float32)
    y = jax.random.normal(ky, (b, n, d_model), jnp.float32)

    raw = init_params(kp, d_model)
    prepared = prepare_params(raw, head)

    fwd = jax.jit(functools.partial(multi_headed_attention2, head=head))
    out = fwd(prepared, x, y)
    jax.block_until_ready(out)
    assert out.shape == (b, n, d_model)
    assert bool(jnp.all(jnp.isfinite(out)))
    err = float(jnp.max(jnp.abs(out - _reference(raw, x, y, head))))
    assert err < 5e-2, f"max abs error vs reference: {err}"

    # --- exercise the fused self-attention path and multi-step online softmax ---
    d2, n2, head2 = 128, 16, 4
    kx2, kp2 = jax.random.split(jax.random.fold_in(key, 7))
    x2 = jax.random.normal(kx2, (b, n2, d2), jnp.float32)
    raw2 = init_params(kp2, d2)
    prepared2 = prepare_params(raw2, head2)
    fwd2 = jax.jit(functools.partial(multi_headed_attention2, head=head2,
                                     self_attention=True, tq=8, tkv=8))
    out2 = fwd2(prepared2, x2, x2)
    jax.block_until_ready(out2)
    assert out2.shape == (b, n2, d2)
    assert bool(jnp.all(jnp.isfinite(out2)))
    err2 = float(jnp.max(jnp.abs(out2 - _reference(raw2, x2, x2, head2))))
    assert err2 < 5e-2, f"max abs error vs reference (self-attn path): {err2}"

    print("KERNEL_OK")
</pallas_src>

<mosaic_0001>
module attributes {stable_mosaic.version = 11 : i64} {
  func.func @_attn_kernel(%arg0: i32, %arg1: i32, %arg2: i32, %arg3: memref<1x8x32xbf16, #tpu.memory_space<vmem>>, %arg4: memref<1x8x64xbf16, #tpu.memory_space<vmem>>, %arg5: memref<32x32xbf16, #tpu.memory_space<vmem>>, %arg6: memref<1x32xf32, #tpu.memory_space<vmem>>, %arg7: memref<1x8x32xf32, #tpu.memory_space<vmem>>, %arg8: memref<8x4xf32, #tpu.memory_space<vmem>>, %arg9: memref<8x4xf32, #tpu.memory_space<vmem>>, %arg10: memref<8x32xf32, #tpu.memory_space<vmem>>) attributes {dimension_semantics = [#tpu.dimension_semantics<parallel>, #tpu.dimension_semantics<parallel>, #tpu.dimension_semantics<arbitrary>], iteration_bounds = array<i64: 2, 1, 1>, scalar_prefetch = 0 : i64, scratch_operands = 3 : i64, tpu.core_type = #tpu.core_type<tc>, window_params = [{transform_indices = @transform_0, window_bounds = array<i64: 1, 8, 32>}, {transform_indices = @transform_1, window_bounds = array<i64: 1, 8, 64>}, {pipeline_mode = #tpu.pipeline_mode<synchronous>, transform_indices = @transform_2, window_bounds = array<i64: 32, 32>}, {pipeline_mode = #tpu.pipeline_mode<synchronous>, transform_indices = @transform_3, window_bounds = array<i64: 1, 32>}, {transform_indices = @transform_4, window_bounds = array<i64: 1, 8, 32>}]} {
    %c0_i32 = arith.constant 0 : i32
    %0 = arith.cmpi eq, %arg2, %c0_i32 : i32
    %1 = arith.extui %0 : i1 to i32
    %c0_i32_0 = arith.constant 0 : i32
    %2 = arith.cmpi ne, %1, %c0_i32_0 : i32
    scf.if %2 {
      %cst_91 = arith.constant 0xFF800000 : f32
      %126 = vector.broadcast %cst_91 : f32 to vector<8x4xf32>
      %c0_92 = arith.constant 0 : index
      %c0_93 = arith.constant 0 : index
      %127 = vector.load %arg8[%c0_92, %c0_93] : memref<8x4xf32, #tpu.memory_space<vmem>>, vector<8x4xf32>
      tpu.vector_store %arg8[%c0_92, %c0_93], %126 {strides = array<i32>} : memref<8x4xf32, #tpu.memory_space<vmem>>, vector<8x4xf32>,
      %cst_94 = arith.constant 0.000000e+00 : f32
      %128 = vector.broadcast %cst_94 : f32 to vector<8x4xf32>
      %c0_95 = arith.constant 0 : index
      %c0_96 = arith.constant 0 : index
      %129 = vector.load %arg9[%c0_95, %c0_96] : memref<8x4xf32, #tpu.memory_space<vmem>>, vector<8x4xf32>
      tpu.vector_store %arg9[%c0_95, %c0_96], %128 {strides = array<i32>} : memref<8x4xf32, #tpu.memory_space<vmem>>, vector<8x4xf32>,
      %cst_97 = arith.constant 0.000000e+00 : f32
      %130 = vector.broadcast %cst_97 : f32 to vector<8x32xf32>
      %c0_98 = arith.constant 0 : index
      %c0_99 = arith.constant 0 : index
      %131 = vector.load %arg10[%c0_98, %c0_99] : memref<8x32xf32, #tpu.memory_space<vmem>>, vector<8x32xf32>
      tpu.vector_store %arg10[%c0_98, %c0_99], %130 {strides = array<i32>} : memref<8x32xf32, #tpu.memory_space<vmem>>, vector<8x32xf32>,
    } else {
    }
    %c0 = arith.constant 0 : index
    %c0_1 = arith.constant 0 : index
    %c0_2 = arith.constant 0 : index
    %3 = vector.load %arg3[%c0, %c0_1, %c0_2] : memref<1x8x32xbf16, #tpu.memory_space<vmem>>, vector<1x8x8xbf16>
    %4 = vector.shape_cast %3 : vector<1x8x8xbf16> to vector<8x8xbf16>
    %c0_3 = arith.constant 0 : index
    %c0_4 = arith.constant 0 : index
    %c0_5 = arith.constant 0 : index
    %5 = vector.load %arg4[%c0_3, %c0_4, %c0_5] : memref<1x8x64xbf16, #tpu.memory_space<vmem>>, vector<1x8x8xbf16>
    %6 = vector.shape_cast %5 : vector<1x8x8xbf16> to vector<8x8xbf16>
    %c0_6 = arith.constant 0 : index
    %c0_7 = arith.constant 0 : index
    %c32 = arith.constant 32 : index
    %7 = vector.load %arg4[%c0_6, %c0_7, %c32] : memref<1x8x64xbf16, #tpu.memory_space<vmem>>, vector<1x8x8xbf16>
    %8 = vector.shape_cast %7 : vector<1x8x8xbf16> to vector<8x8xbf16>
    %cst = arith.constant dense<0.000000e+00> : vector<8x8xf32>
    %9 = tpu.matmul %4, %6, %cst {dimension_numbers = #tpu.dot_dimension_numbers<[1], [1], [0], [0], [0, 0, 1, 0], [], []>} : vector<8x8xbf16>, vector<8x8xbf16>, vector<8x8xf32> -> vector<8x8xf32>
    %c0_8 = arith.constant 0 : index
    %c0_9 = arith.constant 0 : index
    %10 = vector.load %arg8[%c0_8, %c0_9] : memref<8x4xf32, #tpu.memory_space<vmem>>, vector<8x1xf32>
    %cst_10 = arith.constant dense<0xFF800000> : vector<8xf32>
    %11 = vector.multi_reduction <maximumf>, %9, %cst_10 [1] : vector<8x8xf32> to vector<8xf32>
    %12 = vector.shape_cast %11 : vector<8xf32> to vector<8x1xf32>
    %13 = arith.maximumf %10, %12 : vector<8x1xf32>
    %14 = arith.subf %10, %13 : vector<8x1xf32>
    %15 = math.exp %14 : vector<8x1xf32>
    %16 = vector.broadcast %13 : vector<8x1xf32> to vector<8x8xf32>
    %17 = arith.subf %9, %16 : vector<8x8xf32>
    %18 = math.exp %17 : vector<8x8xf32>
    %cst_11 = arith.constant dense<0.000000e+00> : vector<8xf32>
    %19 = vector.multi_reduction <add>, %18, %cst_11 [1] : vector<8x8xf32> to vector<8xf32>
    %20 = vector.shape_cast %19 : vector<8xf32> to vector<8x1xf32>
    %c0_12 = arith.constant 0 : index
    %c0_13 = arith.constant 0 : index
    %21 = vector.load %arg9[%c0_12, %c0_13] : memref<8x4xf32, #tpu.memory_space<vmem>>, vector<8x1xf32>
    %22 = arith.mulf %15, %21 : vector<8x1xf32>
    %23 = arith.addf %22, %20 : vector<8x1xf32>
    %c0_14 = arith.constant 0 : index
    %c0_15 = arith.constant 0 : index
    %24 = vector.load %arg9[%c0_14, %c0_15] : memref<8x4xf32, #tpu.memory_space<vmem>>, vector<8x1xf32>
    tpu.vector_store %arg9[%c0_14, %c0_15], %23 {strides = array<i32>} : memref<8x4xf32, #tpu.memory_space<vmem>>, vector<8x1xf32>,
    %c0_16 = arith.constant 0 : index
    %c0_17 = arith.constant 0 : index
    %25 = vector.load %arg10[%c0_16, %c0_17] : memref<8x32xf32, #tpu.memory_space<vmem>>, vector<8x8xf32>
    %26 = vector.broadcast %15 : vector<8x1xf32> to vector<8x8xf32>
    %27 = arith.mulf %26, %25 : vector<8x8xf32>
    %28 = arith.truncf %18 : vector<8x8xf32> to vector<8x8xbf16>
    %cst_18 = arith.constant dense<0.000000e+00> : vector<8x8xf32>
    %29 = tpu.matmul %28, %8, %cst_18 {dimension_numbers = #tpu.dot_dimension_numbers<[1], [0], [0], [1], [0, 0, 1, 1], [], []>} : vector<8x8xbf16>, vector<8x8xbf16>, vector<8x8xf32> -> vector<8x8xf32>
    %30 = arith.addf %27, %29 : vector<8x8xf32>
    %c0_19 = arith.constant 0 : index
    %c0_20 = arith.constant 0 : index
    %31 = vector.load %arg10[%c0_19, %c0_20] : memref<8x32xf32, #tpu.memory_space<vmem>>, vector<8x8xf32>
    tpu.vector_store %arg10[%c0_19, %c0_20], %30 {strides = array<i32>} : memref<8x32xf32, #tpu.memory_space<vmem>>, vector<8x8xf32>,
    %c0_21 = arith.constant 0 : index
    %c0_22 = arith.constant 0 : index
    %32 = vector.load %arg8[%c0_21, %c0_22] : memref<8x4xf32, #tpu.memory_space<vmem>>, vector<8x1xf32>
    tpu.vector_store %arg8[%c0_21, %c0_22], %13 {strides = array<i32>} : memref<8x4xf32, #tpu.memory_space<vmem>>, vector<8x1xf32>,
    %c0_23 = arith.constant 0 : index
    %c0_24 = arith.constant 0 : index
    %c8 = arith.constant 8 : index
    %33 = vector.load %arg3[%c0_23, %c0_24, %c8] : memref<1x8x32xbf16, #tpu.memory_space<vmem>>, vector<1x8x8xbf16>
    %34 = vector.shape_cast %33 : vector<1x8x8xbf16> to vector<8x8xbf16>
    %c0_25 = arith.constant 0 : index
    %c0_26 = arith.constant 0 : index
    %c8_27 = arith.constant 8 : index
    %35 = vector.load %arg4[%c0_25, %c0_26, %c8_27] : memref<1x8x64xbf16, #tpu.memory_space<vmem>>, vector<1x8x8xbf16>
    %36 = vector.shape_cast %35 : vector<1x8x8xbf16> to vector<8x8xbf16>
    %c0_28 = arith.constant 0 : index
    %c0_29 = arith.constant 0 : index
    %c40 = arith.constant 40 : index
    %37 = vector.load %arg4[%c0_28, %c0_29, %c40] : memref<1x8x64xbf16, #tpu.memory_space<vmem>>, vector<1x8x8xbf16>
    %38 = vector.shape_cast %37 : vector<1x8x8xbf16> to vector<8x8xbf16>
    %cst_30 = arith.constant dense<0.000000e+00> : vector<8x8xf32>
    %39 = tpu.matmul %34, %36, %cst_30 {dimension_numbers = #tpu.dot_dimension_numbers<[1], [1], [0], [0], [0, 0, 1, 0], [], []>} : vector<8x8xbf16>, vector<8x8xbf16>, vector<8x8xf32> -> vector<8x8xf32>
    %c0_31 = arith.constant 0 : index
    %c1 = arith.constant 1 : index
    %40 = vector.load %arg8[%c0_31, %c1] : memref<8x4xf32, #tpu.memory_space<vmem>>, vector<8x1xf32>
    %cst_32 = arith.constant dense<0xFF800000> : vector<8xf32>
    %41 = vector.multi_reduction <maximumf>, %39, %cst_32 [1] : vector<8x8xf32> to vector<8xf32>
    %42 = vector.shape_cast %41 : vector<8xf32> to vector<8x1xf32>
    %43 = arith.maximumf %40, %42 : vector<8x1xf32>
    %44 = arith.subf %40, %43 : vector<8x1xf32>
    %45 = math.exp %44 : vector<8x1xf32>
    %46 = vector.broadcast %43 : vector<8x1xf32> to vector<8x8xf32>
    %47 = arith.subf %39, %46 : vector<8x8xf32>
    %48 = math.exp %47 : vector<8x8xf32>
    %cst_33 = arith.constant dense<0.000000e+00> : vector<8xf32>
    %49 = vector.multi_reduction <add>, %48, %cst_33 [1] : vector<8x8xf32> to vector<8xf32>
    %50 = vector.shape_cast %49 : vector<8xf32> to vector<8x1xf32>
    %c0_34 = arith.constant 0 : index
    %c1_35 = arith.constant 1 : index
    %51 = vector.load %arg9[%c0_34, %c1_35] : memref<8x4xf32, #tpu.memory_space<vmem>>, vector<8x1xf32>
    %52 = arith.mulf %45, %51 : vector<8x1xf32>
    %53 = arith.addf %52, %50 : vector<8x1xf32>
    %c0_36 = arith.constant 0 : index
    %c1_37 = arith.constant 1 : index
    %54 = vector.load %arg9[%c0_36, %c1_37] : memref<8x4xf32, #tpu.memory_space<vmem>>, vector<8x1xf32>
    tpu.vector_store %arg9[%c0_36, %c1_37], %53 {strides = array<i32>} : memref<8x4xf32, #tpu.memory_space<vmem>>, vector<8x1xf32>,
    %c0_38 = arith.constant 0 : index
    %c8_39 = arith.constant 8 : index
    %55 = vector.load %arg10[%c0_38, %c8_39] : memref<8x32xf32, #tpu.memory_space<vmem>>, vector<8x8xf32>
    %56 = vector.broadcast %45 : vector<8x1xf32> to vector<8x8xf32>
    %57 = arith.mulf %56, %55 : vector<8x8xf32>
    %58 = arith.truncf %48 : vector<8x8xf32> to vector<8x8xbf16>
    %cst_40 = arith.constant dense<0.000000e+00> : vector<8x8xf32>
    %59 = tpu.matmul %58, %38, %cst_40 {dimension_numbers = #tpu.dot_dimension_numbers<[1], [0], [0], [1], [0, 0, 1, 1], [], []>} : vector<8x8xbf16>, vector<8x8xbf16>, vector<8x8xf32> -> vector<8x8xf32>
    %60 = arith.addf %57, %59 : vector<8x8xf32>
    %c0_41 = arith.constant 0 : index
    %c8_42 = arith.constant 8 : index
    %61 = vector.load %arg10[%c0_41, %c8_42] : memref<8x32xf32, #tpu.memory_space<vmem>>, vector<8x8xf32>
    tpu.vector_store %arg10[%c0_41, %c8_42], %60 {strides = array<i32>} : memref<8x32xf32, #tpu.memory_space<vmem>>, vector<8x8xf32>,
    %c0_43 = arith.constant 0 : index
    %c1_44 = arith.constant 1 : index
    %62 = vector.load %arg8[%c0_43, %c1_44] : memref<8x4xf32, #tpu.memory_space<vmem>>, vector<8x1xf32>
    tpu.vector_store %arg8[%c0_43, %c1_44], %43 {strides = array<i32>} : memref<8x4xf32, #tpu.memory_space<vmem>>, vector<8x1xf32>,
    %c0_45 = arith.constant 0 : index
    %c0_46 = arith.constant 0 : index
    %c16 = arith.constant 16 : index
    %63 = vector.load %arg3[%c0_45, %c0_46, %c16] : memref<1x8x32xbf16, #tpu.memory_space<vmem>>, vector<1x8x8xbf16>
    %64 = vector.shape_cast %63 : vector<1x8x8xbf16> to vector<8x8xbf16>
    %c0_47 = arith.constant 0 : index
    %c0_48 = arith.constant 0 : index
    %c16_49 = arith.constant 16 : index
    %65 = vector.load %arg4[%c0_47, %c0_48, %c16_49] : memref<1x8x64xbf16, #tpu.memory_space<vmem>>, vector<1x8x8xbf16>
    %66 = vector.shape_cast %65 : vector<1x8x8xbf16> to vector<8x8xbf16>
    %c0_50 = arith.constant 0 : index
    %c0_51 = arith.constant 0 : index
    %c48 = arith.constant 48 : index
    %67 = vector.load %arg4[%c0_50, %c0_51, %c48] : memref<1x8x64xbf16, #tpu.memory_space<vmem>>, vector<1x8x8xbf16>
    %68 = vector.shape_cast %67 : vector<1x8x8xbf16> to vector<8x8xbf16>
    %cst_52 = arith.constant dense<0.000000e+00> : vector<8x8xf32>
    %69 = tpu.matmul %64, %66, %cst_52 {dimension_numbers = #tpu.dot_dimension_numbers<[1], [1], [0], [0], [0, 0, 1, 0], [], []>} : vector<8x8xbf16>, vector<8x8xbf16>, vector<8x8xf32> -> vector<8x8xf32>
    %c0_53 = arith.constant 0 : index
    %c2 = arith.constant 2 : index
    %70 = vector.load %arg8[%c0_53, %c2] : memref<8x4xf32, #tpu.memory_space<vmem>>, vector<8x1xf32>
    %cst_54 = arith.constant dense<0xFF800000> : vector<8xf32>
    %71 = vector.multi_reduction <maximumf>, %69, %cst_54 [1] : vector<8x8xf32> to vector<8xf32>
    %72 = vector.shape_cast %71 : vector<8xf32> to vector<8x1xf32>
    %73 = arith.maximumf %70, %72 : vector<8x1xf32>
    %74 = arith.subf %70, %73 : vector<8x1xf32>
    %75 = math.exp %74 : vector<8x1xf32>
    %76 = vector.broadcast %73 : vector<8x1xf32> to vector<8x8xf32>
    %77 = arith.subf %69, %76 : vector<8x8xf32>
    %78 = math.exp %77 : vector<8x8xf32>
    %cst_55 = arith.constant dense<0.000000e+00> : vector<8xf32>
    %79 = vector.multi_reduction <add>, %78, %cst_55 [1] : vector<8x8xf32> to vector<8xf32>
    %80 = vector.shape_cast %79 : vector<8xf32> to vector<8x1xf32>
    %c0_56 = arith.constant 0 : index
    %c2_57 = arith.constant 2 : index
    %81 = vector.load %arg9[%c0_56, %c2_57] : memref<8x4xf32, #tpu.memory_space<vmem>>, vector<8x1xf32>
    %82 = arith.mulf %75, %81 : vector<8x1xf32>
    %83 = arith.addf %82, %80 : vector<8x1xf32>
    %c0_58 = arith.constant 0 : index
    %c2_59 = arith.constant 2 : index
    %84 = vector.load %arg9[%c0_58, %c2_59] : memref<8x4xf32, #tpu.memory_space<vmem>>, vector<8x1xf32>
    tpu.vector_store %arg9[%c0_58, %c2_59], %83 {strides = array<i32>} : memref<8x4xf32, #tpu.memory_space<vmem>>, vector<8x1xf32>,
    %c0_60 = arith.constant 0 : index
    %c16_61 = arith.constant 16 : index
    %85 = vector.load %arg10[%c0_60, %c16_61] : memref<8x32xf32, #tpu.memory_space<vmem>>, vector<8x8xf32>
    %86 = vector.broadcast %75 : vector<8x1xf32> to vector<8x8xf32>
    %87 = arith.mulf %86, %85 : vector<8x8xf32>
    %88 = arith.truncf %78 : vector<8x8xf32> to vector<8x8xbf16>
    %cst_62 = arith.constant dense<0.000000e+00> : vector<8x8xf32>
    %89 = tpu.matmul %88, %68, %cst_62 {dimension_numbers = #tpu.dot_dimension_numbers<[1], [0], [0], [1], [0, 0, 1, 1], [], []>} : vector<8x8xbf16>, vector<8x8xbf16>, vector<8x8xf32> -> vector<8x8xf32>
    %90 = arith.addf %87, %89 : vector<8x8xf32>
    %c0_63 = arith.constant 0 : index
    %c16_64 = arith.constant 16 : index
    %91 = vector.load %arg10[%c0_63, %c16_64] : memref<8x32xf32, #tpu.memory_space<vmem>>, vector<8x8xf32>
    tpu.vector_store %arg10[%c0_63, %c16_64], %90 {strides = array<i32>} : memref<8x32xf32, #tpu.memory_space<vmem>>, vector<8x8xf32>,
    %c0_65 = arith.constant 0 : index
    %c2_66 = arith.constant 2 : index
    %92 = vector.load %arg8[%c0_65, %c2_66] : memref<8x4xf32, #tpu.memory_space<vmem>>, vector<8x1xf32>
    tpu.vector_store %arg8[%c0_65, %c2_66], %73 {strides = array<i32>} : memref<8x4xf32, #tpu.memory_space<vmem>>, vector<8x1xf32>,
    %c0_67 = arith.constant 0 : index
    %c0_68 = arith.constant 0 : index
    %c24 = arith.constant 24 : index
    %93 = vector.load %arg3[%c0_67, %c0_68, %c24] : memref<1x8x32xbf16, #tpu.memory_space<vmem>>, vector<1x8x8xbf16>
    %94 = vector.shape_cast %93 : vector<1x8x8xbf16> to vector<8x8xbf16>
    %c0_69 = arith.constant 0 : index
    %c0_70 = arith.constant 0 : index
    %c24_71 = arith.constant 24 : index
    %95 = vector.load %arg4[%c0_69, %c0_70, %c24_71] : memref<1x8x64xbf16, #tpu.memory_space<vmem>>, vector<1x8x8xbf16>
    %96 = vector.shape_cast %95 : vector<1x8x8xbf16> to vector<8x8xbf16>
    %c0_72 = arith.constant 0 : index
    %c0_73 = arith.constant 0 : index
    %c56 = arith.constant 56 : index
    %97 = vector.load %arg4[%c0_72, %c0_73, %c56] : memref<1x8x64xbf16, #tpu.memory_space<vmem>>, vector<1x8x8xbf16>
    %98 = vector.shape_cast %97 : vector<1x8x8xbf16> to vector<8x8xbf16>
    %cst_74 = arith.constant dense<0.000000e+00> : vector<8x8xf32>
    %99 = tpu.matmul %94, %96, %cst_74 {dimension_numbers = #tpu.dot_dimension_numbers<[1], [1], [0], [0], [0, 0, 1, 0], [], []>} : vector<8x8xbf16>, vector<8x8xbf16>, vector<8x8xf32> -> vector<8x8xf32>
    %c0_75 = arith.constant 0 : index
    %c3 = arith.constant 3 : index
    %100 = vector.load %arg8[%c0_75, %c3] : memref<8x4xf32, #tpu.memory_space<vmem>>, vector<8x1xf32>
    %cst_76 = arith.constant dense<0xFF800000> : vector<8xf32>
    %101 = vector.multi_reduction <maximumf>, %99, %cst_76 [1] : vector<8x8xf32> to vector<8xf32>
    %102 = vector.shape_cast %101 : vector<8xf32> to vector<8x1xf32>
    %103 = arith.maximumf %100, %102 : vector<8x1xf32>
    %104 = arith.subf %100, %103 : vector<8x1xf32>
    %105 = math.exp %104 : vector<8x1xf32>
    %106 = vector.broadcast %103 : vector<8x1xf32> to vector<8x8xf32>
    %107 = arith.subf %99, %106 : vector<8x8xf32>
    %108 = math.exp %107 : vector<8x8xf32>
    %cst_77 = arith.constant dense<0.000000e+00> : vector<8xf32>
    %109 = vector.multi_reduction <add>, %108, %cst_77 [1] : vector<8x8xf32> to vector<8xf32>
    %110 = vector.shape_cast %109 : vector<8xf32> to vector<8x1xf32>
    %c0_78 = arith.constant 0 : index
    %c3_79 = arith.constant 3 : index
    %111 = vector.load %arg9[%c0_78, %c3_79] : memref<8x4xf32, #tpu.memory_space<vmem>>, vector<8x1xf32>
    %112 = arith.mulf %105, %111 : vector<8x1xf32>
    %113 = arith.addf %112, %110 : vector<8x1xf32>
    %c0_80 = arith.constant 0 : index
    %c3_81 = arith.constant 3 : index
    %114 = vector.load %arg9[%c0_80, %c3_81] : memref<8x4xf32, #tpu.memory_space<vmem>>, vector<8x1xf32>
    tpu.vector_store %arg9[%c0_80, %c3_81], %113 {strides = array<i32>} : memref<8x4xf32, #tpu.memory_space<vmem>>, vector<8x1xf32>,
    %c0_82 = arith.constant 0 : index
    %c24_83 = arith.constant 24 : index
    %115 = vector.load %arg10[%c0_82, %c24_83] : memref<8x32xf32, #tpu.memory_space<vmem>>, vector<8x8xf32>
    %116 = vector.broadcast %105 : vector<8x1xf32> to vector<8x8xf32>
    %117 = arith.mulf %116, %115 : vector<8x8xf32>
    %118 = arith.truncf %108 : vector<8x8xf32> to vector<8x8xbf16>
    %cst_84 = arith.constant dense<0.000000e+00> : vector<8x8xf32>
    %119 = tpu.matmul %118, %98, %cst_84 {dimension_numbers = #tpu.dot_dimension_numbers<[1], [0], [0], [1], [0, 0, 1, 1], [], []>} : vector<8x8xbf16>, vector<8x8xbf16>, vector<8x8xf32> -> vector<8x8xf32>
    %120 = arith.addf %117, %119 : vector<8x8xf32>
    %c0_85 = arith.constant 0 : index
    %c24_86 = arith.constant 24 : index
    %121 = vector.load %arg10[%c0_85, %c24_86] : memref<8x32xf32, #tpu.memory_space<vmem>>, vector<8x8xf32>
    tpu.vector_store %arg10[%c0_85, %c24_86], %120 {strides = array<i32>} : memref<8x32xf32, #tpu.memory_space<vmem>>, vector<8x8xf32>,
    %c0_87 = arith.constant 0 : index
    %c3_88 = arith.constant 3 : index
    %122 = vector.load %arg8[%c0_87, %c3_88] : memref<8x4xf32, #tpu.memory_space<vmem>>, vector<8x1xf32>
    tpu.vector_store %arg8[%c0_87, %c3_88], %103 {strides = array<i32>} : memref<8x4xf32, #tpu.memory_space<vmem>>, vector<8x1xf32>,
    %c0_i32_89 = arith.constant 0 : i32
    %123 = arith.cmpi eq, %arg2, %c0_i32_89 : i32
    %124 = arith.extui %123 : i1 to i32
    %c0_i32_90 = arith.constant 0 : i32
    %125 = arith.cmpi ne, %124, %c0_i32_90 : i32
    scf.if %125 {
      %c0_91 = arith.constant 0 : index
      %c0_92 = arith.constant 0 : index
      %126 = vector.load %arg10[%c0_91, %c0_92] : memref<8x32xf32, #tpu.memory_space<vmem>>, vector<8x8xf32>
      %c0_93 = arith.constant 0 : index
      %c0_94 = arith.constant 0 : index
      %127 = vector.load %arg9[%c0_93, %c0_94] : memref<8x4xf32, #tpu.memory_space<vmem>>, vector<8x1xf32>
      %128 = tpu.reciprocal %127 {approx = true} : vector<8x1xf32> -> vector<8x1xf32>
      %129 = vector.broadcast %128 : vector<8x1xf32> to vector<8x8xf32>
      %130 = arith.mulf %126, %129 : vector<8x8xf32>
      %c0_95 = arith.constant 0 : index
      %c0_96 = arith.constant 0 : index
      %131 = vector.load %arg10[%c0_95, %c0_96] : memref<8x32xf32, #tpu.memory_space<vmem>>, vector<8x8xf32>
      tpu.vector_store %arg10[%c0_95, %c0_96], %130 {strides = array<i32>} : memref<8x32xf32, #tpu.memory_space<vmem>>, vector<8x8xf32>,
      %c0_97 = arith.constant 0 : index
      %c8_98 = arith.constant 8 : index
      %132 = vector.load %arg10[%c0_97, %c8_98] : memref<8x32xf32, #tpu.memory_space<vmem>>, vector<8x8xf32>
      %c0_99 = arith.constant 0 : index
      %c1_100 = arith.constant 1 : index
      %133 = vector.load %arg9[%c0_99, %c1_100] : memref<8x4xf32, #tpu.memory_space<vmem>>, vector<8x1xf32>
      %134 = tpu.reciprocal %133 {approx = true} : vector<8x1xf32> -> vector<8x1xf32>
      %135 = vector.broadcast %134 : vector<8x1xf32> to vector<8x8xf32>
      %136 = arith.mulf %132, %135 : vector<8x8xf32>
      %c0_101 = arith.constant 0 : index
      %c8_102 = arith.constant 8 : index
      %137 = vector.load %arg10[%c0_101, %c8_102] : memref<8x32xf32, #tpu.memory_space<vmem>>, vector<8x8xf32>
      tpu.vector_store %arg10[%c0_101, %c8_102], %136 {strides = array<i32>} : memref<8x32xf32, #tpu.memory_space<vmem>>, vector<8x8xf32>,
      %c0_103 = arith.constant 0 : index
      %c16_104 = arith.constant 16 : index
      %138 = vector.load %arg10[%c0_103, %c16_104] : memref<8x32xf32, #tpu.memory_space<vmem>>, vector<8x8xf32>
      %c0_105 = arith.constant 0 : index
      %c2_106 = arith.constant 2 : index
      %139 = vector.load %arg9[%c0_105, %c2_106] : memref<8x4xf32, #tpu.memory_space<vmem>>, vector<8x1xf32>
      %140 = tpu.reciprocal %139 {approx = true} : vector<8x1xf32> -> vector<8x1xf32>
      %141 = vector.broadcast %140 : vector<8x1xf32> to vector<8x8xf32>
      %142 = arith.mulf %138, %141 : vector<8x8xf32>
      %c0_107 = arith.constant 0 : index
      %c16_108 = arith.constant 16 : index
      %143 = vector.load %arg10[%c0_107, %c16_108] : memref<8x32xf32, #tpu.memory_space<vmem>>, vector<8x8xf32>
      tpu.vector_store %arg10[%c0_107, %c16_108], %142 {strides = array<i32>} : memref<8x32xf32, #tpu.memory_space<vmem>>, vector<8x8xf32>,
      %c0_109 = arith.constant 0 : index
      %c24_110 = arith.constant 24 : index
      %144 = vector.load %arg10[%c0_109, %c24_110] : memref<8x32xf32, #tpu.memory_space<vmem>>, vector<8x8xf32>
      %c0_111 = arith.constant 0 : index
      %c3_112 = arith.constant 3 : index
      %145 = vector.load %arg9[%c0_111, %c3_112] : memref<8x4xf32, #tpu.memory_space<vmem>>, vector<8x1xf32>
      %146 = tpu.reciprocal %145 {approx = true} : vector<8x1xf32> -> vector<8x1xf32>
      %147 = vector.broadcast %146 : vector<8x1xf32> to vector<8x8xf32>
      %148 = arith.mulf %144, %147 : vector<8x8xf32>
      %c0_113 = arith.constant 0 : index
      %c24_114 = arith.constant 24 : index
      %149 = vector.load %arg10[%c0_113, %c24_114] : memref<8x32xf32, #tpu.memory_space<vmem>>, vector<8x8xf32>
      tpu.vector_store %arg10[%c0_113, %c24_114], %148 {strides = array<i32>} : memref<8x32xf32, #tpu.memory_space<vmem>>, vector<8x8xf32>,
      %c0_115 = arith.constant 0 : index
      %c0_116 = arith.constant 0 : index
      %150 = vector.load %arg10[%c0_115, %c0_116] : memref<8x32xf32, #tpu.memory_space<vmem>>, vector<8x32xf32>
      %151 = arith.truncf %150 : vector<8x32xf32> to vector<8x32xbf16>
      %c0_117 = arith.constant 0 : index
      %c0_118 = arith.constant 0 : index
      %152 = vector.load %arg5[%c0_117, %c0_118] : memref<32x32xbf16, #tpu.memory_space<vmem>>, vector<32x32xbf16>
      %cst_119 = arith.constant dense<0.000000e+00> : vector<8x32xf32>
      %153 = tpu.matmul %151, %152, %cst_119 {dimension_numbers = #tpu.dot_dimension_numbers<[1], [0], [0], [1], [0, 0, 1, 1], [], []>} : vector<8x32xbf16>, vector<32x32xbf16>, vector<8x32xf32> -> vector<8x32xf32>
      %c0_120 = arith.constant 0 : index
      %c0_121 = arith.constant 0 : index
      %154 = vector.load %arg6[%c0_120, %c0_121] : memref<1x32xf32, #tpu.memory_space<vmem>>, vector<1x32xf32>
      %155 = vector.broadcast %154 : vector<1x32xf32> to vector<8x32xf32>
      %156 = arith.addf %153, %155 : vector<8x32xf32>
      %c0_122 = arith.constant 0 : index
      %c0_123 = arith.constant 0 : index
      %c0_124 = arith.constant 0 : index
      %157 = vector.load %arg7[%c0_122, %c0_123, %c0_124] : memref<1x8x32xf32, #tpu.memory_space<vmem>>, vector<1x8x32xf32>
      %158 = vector.shape_cast %157 : vector<1x8x32xf32> to vector<8x32xf32>
      %159 = vector.shape_cast %156 : vector<8x32xf32> to vector<1x8x32xf32>
      tpu.vector_store %arg7[%c0_122, %c0_123, %c0_124], %159 {strides = array<i32>} : memref<1x8x32xf32, #tpu.memory_space<vmem>>, vector<1x8x32xf32>,
    } else {
    }
    return
  }
  func.func @transform_0(%arg0: i32, %arg1: i32, %arg2: i32) -> (i32, i32, i32) {
    %c0_i32 = arith.constant 0 : i32
    %c0_i32_0 = arith.constant 0 : i32
    return %arg0, %arg1, %c0_i32 : i32, i32, i32
  }
  func.func @transform_1(%arg0: i32, %arg1: i32, %arg2: i32) -> (i32, i32, i32) {
    %c0_i32 = arith.constant 0 : i32
    %c0_i32_0 = arith.constant 0 : i32
    return %arg0, %arg2, %c0_i32 : i32, i32, i32
  }
  func.func @transform_2(%arg0: i32, %arg1: i32, %arg2: i32) -> (i32, i32) {
    %c0_i32 = arith.constant 0 : i32
    %c0_i32_0 = arith.constant 0 : i32
    %c0_i32_1 = arith.constant 0 : i32
    return %c0_i32, %c0_i32_0 : i32, i32
  }
  func.func @transform_3(%arg0: i32, %arg1: i32, %arg2: i32) -> (i32, i32) {
    %c0_i32 = arith.constant 0 : i32
    %c0_i32_0 = arith.constant 0 : i32
    %c0_i32_1 = arith.constant 0 : i32
    return %c0_i32, %c0_i32_0 : i32, i32
  }
  func.func @transform_4(%arg0: i32, %arg1: i32, %arg2: i32) -> (i32, i32, i32) {
    %c0_i32 = arith.constant 0 : i32
    %c0_i32_0 = arith.constant 0 : i32
    return %arg0, %arg1, %c0_i32 : i32, i32, i32
  }
}

module attributes {stable_mosaic.version = 11 : i64} {
  func.func @_linear_kernel(%arg0: i32, %arg1: i32, %arg2: i32, %arg3: memref<16x32xf32, #tpu.memory_space<vmem>>, %arg4: memref<32x32xbf16, #tpu.memory_space<vmem>>, %arg5: memref<1x32xf32, #tpu.memory_space<vmem>>, %arg6: memref<16x32xbf16, #tpu.memory_space<vmem>>, %arg7: memref<16x32xf32, #tpu.memory_space<vmem>>) attributes {dimension_semantics = [#tpu.dimension_semantics<parallel>, #tpu.dimension_semantics<parallel>, #tpu.dimension_semantics<arbitrary>], iteration_bounds = array<i64: 1, 1, 1>, scalar_prefetch = 0 : i64, scratch_operands = 1 : i64, tpu.core_type = #tpu.core_type<tc>, window_params = [{transform_indices = @transform_0, window_bounds = array<i64: 16, 32>}, {transform_indices = @transform_1, window_bounds = array<i64: 32, 32>}, {transform_indices = @transform_2, window_bounds = array<i64: 1, 32>}, {transform_indices = @transform_3, window_bounds = array<i64: 16, 32>}]} {
    %c0_i32 = arith.constant 0 : i32
    %0 = arith.cmpi eq, %arg2, %c0_i32 : i32
    %1 = arith.extui %0 : i1 to i32
    %c0_i32_0 = arith.constant 0 : i32
    %2 = arith.cmpi ne, %1, %c0_i32_0 : i32
    scf.if %2 {
      %cst_10 = arith.constant 0.000000e+00 : f32
      %13 = vector.broadcast %cst_10 : f32 to vector<16x32xf32>
      %c0_11 = arith.constant 0 : index
      %c0_12 = arith.constant 0 : index
      %14 = vector.load %arg7[%c0_11, %c0_12] : memref<16x32xf32, #tpu.memory_space<vmem>>, vector<16x32xf32>
      tpu.vector_store %arg7[%c0_11, %c0_12], %13 {strides = array<i32>} : memref<16x32xf32, #tpu.memory_space<vmem>>, vector<16x32xf32>,
    } else {
    }
    %c0 = arith.constant 0 : index
    %c0_1 = arith.constant 0 : index
    %3 = vector.load %arg7[%c0, %c0_1] : memref<16x32xf32, #tpu.memory_space<vmem>>, vector<16x32xf32>
    %c0_2 = arith.constant 0 : index
    %c0_3 = arith.constant 0 : index
    %4 = vector.load %arg3[%c0_2, %c0_3] : memref<16x32xf32, #tpu.memory_space<vmem>>, vector<16x32xf32>
    %5 = arith.truncf %4 : vector<16x32xf32> to vector<16x32xbf16>
    %c0_4 = arith.constant 0 : index
    %c0_5 = arith.constant 0 : index
    %6 = vector.load %arg4[%c0_4, %c0_5] : memref<32x32xbf16, #tpu.memory_space<vmem>>, vector<32x32xbf16>
    %cst = arith.constant dense<0.000000e+00> : vector<16x32xf32>
    %7 = tpu.matmul %5, %6, %cst {dimension_numbers = #tpu.dot_dimension_numbers<[1], [0], [0], [1], [0, 0, 1, 1], [], []>} : vector<16x32xbf16>, vector<32x32xbf16>, vector<16x32xf32> -> vector<16x32xf32>
    %8 = arith.addf %3, %7 : vector<16x32xf32>
    %c0_6 = arith.constant 0 : index
    %c0_7 = arith.constant 0 : index
    %9 = vector.load %arg7[%c0_6, %c0_7] : memref<16x32xf32, #tpu.memory_space<vmem>>, vector<16x32xf32>
    tpu.vector_store %arg7[%c0_6, %c0_7], %8 {strides = array<i32>} : memref<16x32xf32, #tpu.memory_space<vmem>>, vector<16x32xf32>,
    %c0_i32_8 = arith.constant 0 : i32
    %10 = arith.cmpi eq, %arg2, %c0_i32_8 : i32
    %11 = arith.extui %10 : i1 to i32
    %c0_i32_9 = arith.constant 0 : i32
    %12 = arith.cmpi ne, %11, %c0_i32_9 : i32
    scf.if %12 {
      %c0_10 = arith.constant 0 : index
      %c0_11 = arith.constant 0 : index
      %13 = vector.load %arg7[%c0_10, %c0_11] : memref<16x32xf32, #tpu.memory_space<vmem>>, vector<16x32xf32>
      %c0_12 = arith.constant 0 : index
      %c0_13 = arith.constant 0 : index
      %14 = vector.load %arg5[%c0_12, %c0_13] : memref<1x32xf32, #tpu.memory_space<vmem>>, vector<1x32xf32>
      %15 = vector.broadcast %14 : vector<1x32xf32> to vector<16x32xf32>
      %16 = arith.addf %13, %15 : vector<16x32xf32>
      %17 = arith.truncf %16 : vector<16x32xf32> to vector<16x32xbf16>
      %c0_14 = arith.constant 0 : index
      %c0_15 = arith.constant 0 : index
      %18 = vector.load %arg6[%c0_14, %c0_15] : memref<16x32xbf16, #tpu.memory_space<vmem>>, vector<16x32xbf16>
      tpu.vector_store %arg6[%c0_14, %c0_15], %17 {strides = array<i32>} : memref<16x32xbf16, #tpu.memory_space<vmem>>, vector<16x32xbf16>,
    } else {
    }
    return
  }
  func.func @transform_0(%arg0: i32, %arg1: i32, %arg2: i32) -> (i32, i32) {
    %c0_i32 = arith.constant 0 : i32
    return %arg0, %arg2 : i32, i32
  }
  func.func @transform_1(%arg0: i32, %arg1: i32, %arg2: i32) -> (i32, i32) {
    %c0_i32 = arith.constant 0 : i32
    return %arg2, %arg1 : i32, i32
  }
  func.func @transform_2(%arg0: i32, %arg1: i32, %arg2: i32) -> (i32, i32) {
    %c0_i32 = arith.constant 0 : i32
    %c0_i32_0 = arith.constant 0 : i32
    return %c0_i32, %arg1 : i32, i32
  }
  func.func @transform_3(%arg0: i32, %arg1: i32, %arg2: i32) -> (i32, i32) {
    %c0_i32 = arith.constant 0 : i32
    return %arg0, %arg1 : i32, i32
  }
}

module attributes {stable_mosaic.version = 11 : i64} {
  func.func @_linear_kernel(%arg0: i32, %arg1: i32, %arg2: i32, %arg3: memref<16x32xf32, #tpu.memory_space<vmem>>, %arg4: memref<32x64xbf16, #tpu.memory_space<vmem>>, %arg5: memref<1x64xf32, #tpu.memory_space<vmem>>, %arg6: memref<16x64xbf16, #tpu.memory_space<vmem>>, %arg7: memref<16x64xf32, #tpu.memory_space<vmem>>) attributes {dimension_semantics = [#tpu.dimension_semantics<parallel>, #tpu.dimension_semantics<parallel>, #tpu.dimension_semantics<arbitrary>], iteration_bounds = array<i64: 1, 1, 1>, scalar_prefetch = 0 : i64, scratch_operands = 1 : i64, tpu.core_type = #tpu.core_type<tc>, window_params = [{transform_indices = @transform_0, window_bounds = array<i64: 16, 32>}, {transform_indices = @transform_1, window_bounds = array<i64: 32, 64>}, {transform_indices = @transform_2, window_bounds = array<i64: 1, 64>}, {transform_indices = @transform_3, window_bounds = array<i64: 16, 64>}]} {
    %c0_i32 = arith.constant 0 : i32
    %0 = arith.cmpi eq, %arg2, %c0_i32 : i32
    %1 = arith.extui %0 : i1 to i32
    %c0_i32_0 = arith.constant 0 : i32
    %2 = arith.cmpi ne, %1, %c0_i32_0 : i32
    scf.if %2 {
      %cst_10 = arith.constant 0.000000e+00 : f32
      %13 = vector.broadcast %cst_10 : f32 to vector<16x64xf32>
      %c0_11 = arith.constant 0 : index
      %c0_12 = arith.constant 0 : index
      %14 = vector.load %arg7[%c0_11, %c0_12] : memref<16x64xf32, #tpu.memory_space<vmem>>, vector<16x64xf32>
      tpu.vector_store %arg7[%c0_11, %c0_12], %13 {strides = array<i32>} : memref<16x64xf32, #tpu.memory_space<vmem>>, vector<16x64xf32>,
    } else {
    }
    %c0 = arith.constant 0 : index
    %c0_1 = arith.constant 0 : index
    %3 = vector.load %arg7[%c0, %c0_1] : memref<16x64xf32, #tpu.memory_space<vmem>>, vector<16x64xf32>
    %c0_2 = arith.constant 0 : index
    %c0_3 = arith.constant 0 : index
    %4 = vector.load %arg3[%c0_2, %c0_3] : memref<16x32xf32, #tpu.memory_space<vmem>>, vector<16x32xf32>
    %5 = arith.truncf %4 : vector<16x32xf32> to vector<16x32xbf16>
    %c0_4 = arith.constant 0 : index
    %c0_5 = arith.constant 0 : index
    %6 = vector.load %arg4[%c0_4, %c0_5] : memref<32x64xbf16, #tpu.memory_space<vmem>>, vector<32x64xbf16>
    %cst = arith.constant dense<0.000000e+00> : vector<16x64xf32>
    %7 = tpu.matmul %5, %6, %cst {dimension_numbers = #tpu.dot_dimension_numbers<[1], [0], [0], [1], [0, 0, 1, 1], [], []>} : vector<16x32xbf16>, vector<32x64xbf16>, vector<16x64xf32> -> vector<16x64xf32>
    %8 = arith.addf %3, %7 : vector<16x64xf32>
    %c0_6 = arith.constant 0 : index
    %c0_7 = arith.constant 0 : index
    %9 = vector.load %arg7[%c0_6, %c0_7] : memref<16x64xf32, #tpu.memory_space<vmem>>, vector<16x64xf32>
    tpu.vector_store %arg7[%c0_6, %c0_7], %8 {strides = array<i32>} : memref<16x64xf32, #tpu.memory_space<vmem>>, vector<16x64xf32>,
    %c0_i32_8 = arith.constant 0 : i32
    %10 = arith.cmpi eq, %arg2, %c0_i32_8 : i32
    %11 = arith.extui %10 : i1 to i32
    %c0_i32_9 = arith.constant 0 : i32
    %12 = arith.cmpi ne, %11, %c0_i32_9 : i32
    scf.if %12 {
      %c0_10 = arith.constant 0 : index
      %c0_11 = arith.constant 0 : index
      %13 = vector.load %arg7[%c0_10, %c0_11] : memref<16x64xf32, #tpu.memory_space<vmem>>, vector<16x64xf32>
      %c0_12 = arith.constant 0 : index
      %c0_13 = arith.constant 0 : index
      %14 = vector.load %arg5[%c0_12, %c0_13] : memref<1x64xf32, #tpu.memory_space<vmem>>, vector<1x64xf32>
      %15 = vector.broadcast %14 : vector<1x64xf32> to vector<16x64xf32>
      %16 = arith.addf %13, %15 : vector<16x64xf32>
      %17 = arith.truncf %16 : vector<16x64xf32> to vector<16x64xbf16>
      %c0_14 = arith.constant 0 : index
      %c0_15 = arith.constant 0 : index
      %18 = vector.load %arg6[%c0_14, %c0_15] : memref<16x64xbf16, #tpu.memory_space<vmem>>, vector<16x64xbf16>
      tpu.vector_store %arg6[%c0_14, %c0_15], %17 {strides = array<i32>} : memref<16x64xbf16, #tpu.memory_space<vmem>>, vector<16x64xbf16>,
    } else {
    }
    return
  }
  func.func @transform_0(%arg0: i32, %arg1: i32, %arg2: i32) -> (i32, i32) {
    %c0_i32 = arith.constant 0 : i32
    return %arg0, %arg2 : i32, i32
  }
  func.func @transform_1(%arg0: i32, %arg1: i32, %arg2: i32) -> (i32, i32) {
    %c0_i32 = arith.constant 0 : i32
    return %arg2, %arg1 : i32, i32
  }
  func.func @transform_2(%arg0: i32, %arg1: i32, %arg2: i32) -> (i32, i32) {
    %c0_i32 = arith.constant 0 : i32
    %c0_i32_0 = arith.constant 0 : i32
    return %c0_i32, %arg1 : i32, i32
  }
  func.func @transform_3(%arg0: i32, %arg1: i32, %arg2: i32) -> (i32, i32) {
    %c0_i32 = arith.constant 0 : i32
    return %arg0, %arg1 : i32, i32
  }
}

</mosaic_0001>

<llo_original>
// kernel: multi_headed_attention2.4
$region0: #{multi_headed_attention2.4}
  #allocation0 [shape = 'u32[]', space=smem, size = 0x4, offset = 0x4, fixed_abs, tag = 'smem constant byte address 0x4 - core index']
  #allocation1 [shape = 'u32[72,128]{1,0:T(1,128)}', space=vmem, size = 0x9000, scoped, tag = 'internal scratch']
  #allocation2 [shape = 'f32[16,64]{1,0:T(8,128)}', space=vmem, size = 0x2000, scoped, tag = 'scratch operand']
  %s0 = inlined_call_operand.hbm [shape: f32[16,32], index: 0, kind: input, shape index: {}]
  %s1 = inlined_call_operand.hbm [shape: bf16[32,64], index: 1, kind: input, shape index: {}]
  %s2 = inlined_call_operand.hbm [shape: f32[1,64], index: 2, kind: input, shape index: {}]
  %s3 = inlined_call_operand.vmem [shape: bf16[16,64], index: 3, kind: output, shape index: {}]
  %s4 = sld [smem:[#allocation0]]
  $region42: #{multi_headed_attention2.4} parent=0
    _
  %s6 = ssub.s32 1, %s4
  %s7 = scalar_select 0, %s6, %s4
  $region1: #{multi_headed_attention2.4} parent=0
    #allocation3 [shape = 'u8[8192]{0}', space=vmem, size = 0x2000, scoped, tag = 'input window, operand 0, single buffered']
    #allocation4 [shape = 's32[1]{0}', space=sflag, size = 0x4, scoped, tag = 'scoped memory for multi_headed_attention2.4']
    #allocation5 [shape = 'u8[8192]{0}', space=vmem, size = 0x2000, scoped, tag = 'input window, operand 1, single buffered']
    #allocation6 [shape = 's32[1]{0}', space=sflag, size = 0x4, scoped, tag = 'scoped memory for multi_headed_attention2.4']
    #allocation7 [shape = 'u8[512]{0}', space=vmem, size = 0x400, scoped, tag = 'input window, operand 2, single buffered']
    %8 = vsyncpa [#allocation4], 0
    %9 = vsyncpa [#allocation6], 0
    // Predicated region
    $region2: #{multi_headed_attention2.4} parent=1 // pred_check
      _
    $region3: #{multi_headed_attention2.4} parent=1 // pred_check_branch
      %11 = sbr.rel (0) target = $region5
    $region4: #{multi_headed_attention2.4} parent=1 // pred_region
      %13 = vsyncadd [#allocation4], 0
      %s14 = sshll.u32 %s0, 4
      %s15 = int_to_ptr.hbm [resolvable:$true] %s14
      %s16 = sshll.u32 [#allocation3], 4
      %s17 = int_to_ptr.vmem [resolvable:$true] %s16
      %22 = dma.hbm_to_vmem [thread:$0]  %s15, 256, %s17, [#allocation4], 128, 128, 8
    $region5: #{multi_headed_attention2.4} parent=1 // pred_fallthru
      _
    // Predicated region
    $region6: #{multi_headed_attention2.4} parent=1 // pred_check
      _
    $region7: #{multi_headed_attention2.4} parent=1 // pred_check_branch
      %24 = sbr.rel (0) target = $region9
    $region8: #{multi_headed_attention2.4} parent=1 // pred_region
      %26 = vsyncadd [#allocation6], 0
      %s27 = sshll.u32 %s1, 4
      %s28 = int_to_ptr.hbm [resolvable:$true] %s27
      %s29 = sshll.u32 [#allocation5], 4
      %s30 = int_to_ptr.vmem [resolvable:$true] %s29
      %35 = dma.hbm_to_vmem [thread:$0]  %s28, 256, %s30, [#allocation6], 64, 64, 4
    $region9: #{multi_headed_attention2.4} parent=1 // pred_fallthru
      _
    // Predicated region
    $region10: #{multi_headed_attention2.4} parent=1 // pred_check
      _
    $region11: #{multi_headed_attention2.4} parent=1 // pred_check_branch
      %37 = sbr.rel (0) target = $region13
    $region12: #{multi_headed_attention2.4} parent=1 // pred_region
      %39 = vsyncadd [#allocation6], 0
      %s41 = sshll.u32 %s2, 4
      %s42 = int_to_ptr.hbm [resolvable:$true] %s41
      %s43 = sshll.u32 [#allocation7], 4
      %s44 = int_to_ptr.vmem [resolvable:$true] %s43
      %46 = dma.hbm_to_vmem [thread:$0]  %s42, 16, %s44, [#allocation6]
    $region13: #{multi_headed_attention2.4} parent=1 // pred_fallthru
      _
    // Predicated region
    $region14: #{multi_headed_attention2.4} parent=1 // pred_check
      _
    $region15: #{multi_headed_attention2.4} parent=1 // pred_check_branch
      %48 = sbr.rel (0) target = $region17
    $region16: #{multi_headed_attention2.4} parent=1 // pred_region
      %50 = dma.done [#allocation4], 256
    $region17: #{multi_headed_attention2.4} parent=1 // pred_fallthru
      _
    // Predicated region
    $region18: #{multi_headed_attention2.4} parent=1 // pred_check
      _
    $region19: #{multi_headed_attention2.4} parent=1 // pred_check_branch
      %52 = sbr.rel (0) target = $region21
    $region20: #{multi_headed_attention2.4} parent=1 // pred_region
      %54 = dma.done [#allocation6], 256
    $region21: #{multi_headed_attention2.4} parent=1 // pred_fallthru
      _
    // Predicated region
    $region22: #{multi_headed_attention2.4} parent=1 // pred_check
      _
    $region23: #{multi_headed_attention2.4} parent=1 // pred_check_branch
      %56 = sbr.rel (0) target = $region25
    $region24: #{multi_headed_attention2.4} parent=1 // pred_region
      %58 = dma.done [#allocation6], 16
    $region25: #{multi_headed_attention2.4} parent=1 // pred_fallthru
      _
    %p60 = scmp.eq.s32.totalorder 0, 0
    // Predicated region
    $region26: #{multi_headed_attention2.4} parent=1 // pred_check
      %p61 = pneg %p60
    $region27: #{multi_headed_attention2.4} parent=1 // pred_check_branch
      %63 = sbr.rel (%p61) target = $region29
    $region28: #{multi_headed_attention2.4} parent=1 // pred_region
      %vm64 = vcmask 523264
      %65 = vst.msk [vmem:[#allocation2] sm:$0xff] %vm64, 0.0
      %66 = vst.msk [vmem:[#allocation2 + $0x8] sm:$0xff] %vm64, 0.0
    $region29: #{multi_headed_attention2.4} parent=1 // pred_fallthru
      _
    %v67 = vld [vmem:[#allocation2] sm:$0xff]
    %v68 = vld [vmem:[#allocation2 + $0x8] sm:$0xff]
    %v69 = vld [vmem:[#allocation3] sm:$0xff]
    %v70 = vld [vmem:[#allocation3 + $0x8] sm:$0xff]
    %v71 = vpack.c.bf16 %v70, %v69
    %v72 = vld [vmem:[#allocation5] sm:$0xf]
    %v73 = vld [vmem:[#allocation5 + $0x4] sm:$0xf]
    %v74 = vld [vmem:[#allocation5 + $0x8] sm:$0xf]
    %v75 = vld [vmem:[#allocation5 + $0xc] sm:$0xf]
    %v80 = vunpack.c.l.b16 %v72
    %v81 = vunpack.c.l.b16 %v73
    %v82 = vunpack.c.l.b16 %v74
    %v83 = vunpack.c.l.b16 %v75
    %v84 = vpack.c.b16 %v81, %v80
    %v85 = vpack.c.b16 %v83, %v82
    %vm88 = vcmask 261120
    %v90 = vsel %vm88, %v71, 0
    %92 = vmatpush.bf16.msra.mxu0 0
    %93 = vmatpush.bf16.msra.mxu0 0
    %94 = vmatpush.bf16.msra.mxu0 0
    %95 = vmatpush.bf16.msra.mxu0 0
    %96 = vmatpush.bf16.msra.mxu0 0
    %97 = vmatpush.bf16.msra.mxu0 0
    %98 = vmatpush.bf16.msra.mxu0 %v85
    %99 = vmatpush.bf16.msra.mxu0 %v84
    %100 = vmatmul.bf16.gmra.mxu0 %v90
    %v101 = vpop.f32.mrf.mxu0
    %v102 = vadd.f32 0.0, %v101
    %v103 = vpop.f32.mrf.mxu0
    %v104 = vadd.f32 0.0, %v103
    %105 = vdwg.mxu0
    %v106 = vadd.f32 %v67, %v102
    %v107 = vadd.f32 %v68, %v104
    %vm108 = vcmask 523264
    %109 = vst.msk [vmem:[#allocation2] sm:$0xff] %vm108, %v106
    %110 = vst.msk [vmem:[#allocation2 + $0x8] sm:$0xff] %vm108, %v107
    // Predicated region
    $region30: #{multi_headed_attention2.4} parent=1 // pred_check
      %p111 = pneg %p60
    $region31: #{multi_headed_attention2.4} parent=1 // pred_check_branch
      %113 = sbr.rel (%p111) target = $region33
    $region32: #{multi_headed_attention2.4} parent=1 // pred_region
      %v114 = vld [vmem:[#allocation2] sm:$0xff]
      %v115 = vld [vmem:[#allocation2 + $0x8] sm:$0xff]
      %v116 = vld [vmem:[#allocation7] sm:$0x1]
      %v118 = vperm.slane %v116, 0
      %v120 = vadd.f32 %v114, %v118
      %v121 = vadd.f32 %v115, %v118
      %v122 = vpack.c.bf16 %v120, %v120
      %v123 = vpack.c.bf16 %v121, %v121
      %vm124 = vcmask 519168
      %125 = vst.msk [vmem:[%s3] sm:$0xf] %vm124, %v122
      %126 = vst.msk [vmem:[%s3 + $0x4] sm:$0xf] %vm124, %v123
    $region33: #{multi_headed_attention2.4} parent=1 // pred_fallthru
      _
    // Predicated region
    $region34: #{multi_headed_attention2.4} parent=1 // pred_check
      _
    $region35: #{multi_headed_attention2.4} parent=1 // pred_check_branch
      %128 = sbr.rel (0) target = $region37
    $region36: #{multi_headed_attention2.4} parent=1 // pred_region
      _
    $region37: #{multi_headed_attention2.4} parent=1 // pred_fallthru
      _
    // Predicated region
    $region38: #{multi_headed_attention2.4} parent=1 // pred_check
      _
    $region39: #{multi_headed_attention2.4} parent=1 // pred_check_branch
      %130 = sbr.rel (0) target = $region41
    $region40: #{multi_headed_attention2.4} parent=1 // pred_region
      _
    $region41: #{multi_headed_attention2.4} parent=1 // pred_fallthru
      _
    %131 = vsyncpa [#allocation4], 1
    %132 = vsyncpa [#allocation6], 1

// kernel: multi_headed_attention2.3
$region0: #{multi_headed_attention2.3}
  #allocation0 [shape = 'u32[]', space=smem, size = 0x4, offset = 0x4, fixed_abs, tag = 'smem constant byte address 0x4 - core index']
  #allocation1 [shape = 'u32[72,128]{1,0:T(1,128)}', space=vmem, size = 0x9000, scoped, tag = 'internal scratch']
  #allocation2 [shape = 'f32[16,32]{1,0:T(8,128)}', space=vmem, size = 0x2000, scoped, tag = 'scratch operand']
  %s0 = inlined_call_operand.vmem [shape: f32[16,32], index: 0, kind: input, shape index: {}]
  %s1 = inlined_call_operand.hbm [shape: bf16[32,32], index: 1, kind: input, shape index: {}]
  %s2 = inlined_call_operand.vmem [shape: f32[1,32], index: 2, kind: input, shape index: {}]
  %s3 = inlined_call_operand.vmem [shape: bf16[16,32], index: 3, kind: output, shape index: {}]
  %s4 = sld [smem:[#allocation0]]
  $region34: #{multi_headed_attention2.3} parent=0
    _
  %s6 = ssub.s32 1, %s4
  %s7 = scalar_select 0, %s6, %s4
  $region1: #{multi_headed_attention2.3} parent=0
    #allocation3 [shape = 'u8[8192]{0}', space=vmem, size = 0x2000, scoped, tag = 'input window, operand 1, single buffered']
    #allocation4 [shape = 's32[1]{0}', space=sflag, size = 0x4, scoped, tag = 'scoped memory for multi_headed_attention2.3']
    %8 = vsyncpa [#allocation4], 0
    // Predicated region
    $region2: #{multi_headed_attention2.3} parent=1 // pred_check
      _
    $region3: #{multi_headed_attention2.3} parent=1 // pred_check_branch
      %10 = sbr.rel (0) target = $region5
    $region4: #{multi_headed_attention2.3} parent=1 // pred_region
      _
    $region5: #{multi_headed_attention2.3} parent=1 // pred_fallthru
      _
    // Predicated region
    $region6: #{multi_headed_attention2.3} parent=1 // pred_check
      _
    $region7: #{multi_headed_attention2.3} parent=1 // pred_check_branch
      %12 = sbr.rel (0) target = $region9
    $region8: #{multi_headed_attention2.3} parent=1 // pred_region
      %14 = vsyncadd [#allocation4], 0
      %s15 = sshll.u32 %s1, 4
      %s16 = int_to_ptr.hbm [resolvable:$true] %s15
      %s17 = sshll.u32 [#allocation3], 4
      %s18 = int_to_ptr.vmem [resolvable:$true] %s17
      %23 = dma.hbm_to_vmem [thread:$0]  %s16, 256, %s18, [#allocation4], 64, 64, 4
    $region9: #{multi_headed_attention2.3} parent=1 // pred_fallthru
      _
    // Predicated region
    $region10: #{multi_headed_attention2.3} parent=1 // pred_check
      _
    $region11: #{multi_headed_attention2.3} parent=1 // pred_check_branch
      %25 = sbr.rel (0) target = $region13
    $region12: #{multi_headed_attention2.3} parent=1 // pred_region
      _
    $region13: #{multi_headed_attention2.3} parent=1 // pred_fallthru
      _
    // Predicated region
    $region14: #{multi_headed_attention2.3} parent=1 // pred_check
      _
    $region15: #{multi_headed_attention2.3} parent=1 // pred_check_branch
      %27 = sbr.rel (0) target = $region17
    $region16: #{multi_headed_attention2.3} parent=1 // pred_region
      %29 = dma.done [#allocation4], 256
    $region17: #{multi_headed_attention2.3} parent=1 // pred_fallthru
      _
    %p31 = scmp.eq.s32.totalorder 0, 0
    // Predicated region
    $region18: #{multi_headed_attention2.3} parent=1 // pred_check
      %p32 = pneg %p31
    $region19: #{multi_headed_attention2.3} parent=1 // pred_check_branch
      %34 = sbr.rel (%p32) target = $region21
    $region20: #{multi_headed_attention2.3} parent=1 // pred_region
      %vm35 = vcmask 261120
      %36 = vst.msk [vmem:[#allocation2] sm:$0xff] %vm35, 0.0
      %37 = vst.msk [vmem:[#allocation2 + $0x8] sm:$0xff] %vm35, 0.0
    $region21: #{multi_headed_attention2.3} parent=1 // pred_fallthru
      _
    %v38 = vld [vmem:[#allocation2] sm:$0xff]
    %v39 = vld [vmem:[#allocation2 + $0x8] sm:$0xff]
    %v40 = vld [vmem:[%s0] sm:$0xff]
    %v41 = vld [vmem:[%s0 + $0x8] sm:$0xff]
    %v42 = vpack.c.bf16 %v41, %v40
    %v43 = vld [vmem:[#allocation3] sm:$0xf]
    %v44 = vld [vmem:[#allocation3 + $0x4] sm:$0xf]
    %v45 = vld [vmem:[#allocation3 + $0x8] sm:$0xf]
    %v46 = vld [vmem:[#allocation3 + $0xc] sm:$0xf]
    %v51 = vunpack.c.l.b16 %v43
    %v52 = vunpack.c.l.b16 %v44
    %v53 = vunpack.c.l.b16 %v45
    %v54 = vunpack.c.l.b16 %v46
    %v55 = vpack.c.b16 %v52, %v51
    %v56 = vpack.c.b16 %v54, %v53
    %vm59 = vcmask 261120
    %v61 = vsel %vm59, %v42, 0
    %63 = vmatpush.bf16.msra.mxu0 0
    %64 = vmatpush.bf16.msra.mxu0 0
    %65 = vmatpush.bf16.msra.mxu0 0
    %66 = vmatpush.bf16.msra.mxu0 0
    %67 = vmatpush.bf16.msra.mxu0 0
    %68 = vmatpush.bf16.msra.mxu0 0
    %69 = vmatpush.bf16.msra.mxu0 %v56
    %70 = vmatpush.bf16.msra.mxu0 %v55
    %71 = vmatmul.bf16.gmra.mxu0 %v61
    %v72 = vpop.f32.mrf.mxu0
    %v73 = vadd.f32 0.0, %v72
    %v74 = vpop.f32.mrf.mxu0
    %v75 = vadd.f32 0.0, %v74
    %76 = vdwg.mxu0
    %v77 = vadd.f32 %v38, %v73
    %v78 = vadd.f32 %v39, %v75
    %79 = vst.msk [vmem:[#allocation2] sm:$0xff] %vm59, %v77
    %80 = vst.msk [vmem:[#allocation2 + $0x8] sm:$0xff] %vm59, %v78
    // Predicated region
    $region22: #{multi_headed_attention2.3} parent=1 // pred_check
      %p81 = pneg %p31
    $region23: #{multi_headed_attention2.3} parent=1 // pred_check_branch
      %83 = sbr.rel (%p81) target = $region25
    $region24: #{multi_headed_attention2.3} parent=1 // pred_region
      %v84 = vld [vmem:[#allocation2] sm:$0xff]
      %v85 = vld [vmem:[#allocation2 + $0x8] sm:$0xff]
      %v86 = vld [vmem:[%s2] sm:$0x1]
      %v88 = vperm.slane %v86, 0
      %v90 = vadd.f32 %v84, %v88
      %v91 = vadd.f32 %v85, %v88
      %v92 = vpack.c.bf16 %v90, %v90
      %v93 = vpack.c.bf16 %v91, %v91
      %vm94 = vcmask 257024
      %95 = vst.msk [vmem:[%s3] sm:$0xf] %vm94, %v92
      %96 = vst.msk [vmem:[%s3 + $0x4] sm:$0xf] %vm94, %v93
    $region25: #{multi_headed_attention2.3} parent=1 // pred_fallthru
      _
    // Predicated region
    $region26: #{multi_headed_attention2.3} parent=1 // pred_check
      _
    $region27: #{multi_headed_attention2.3} parent=1 // pred_check_branch
      %98 = sbr.rel (0) target = $region29
    $region28: #{multi_headed_attention2.3} parent=1 // pred_region
      _
    $region29: #{multi_headed_attention2.3} parent=1 // pred_fallthru
      _
    // Predicated region
    $region30: #{multi_headed_attention2.3} parent=1 // pred_check
      _
    $region31: #{multi_headed_attention2.3} parent=1 // pred_check_branch
      %100 = sbr.rel (0) target = $region33
    $region32: #{multi_headed_attention2.3} parent=1 // pred_region
      _
    $region33: #{multi_headed_attention2.3} parent=1 // pred_fallthru
      _
    %101 = vsyncpa [#allocation4], 1

// kernel: multi_headed_attention2.5
$region0: #{multi_headed_attention2.5}
  #allocation0 [shape = 'u32[]', space=smem, size = 0x4, offset = 0x4, fixed_abs, tag = 'smem constant byte address 0x4 - core index']
  #allocation1 [shape = 'u32[72,128]{1,0:T(1,128)}', space=vmem, size = 0x9000, scoped, tag = 'internal scratch']
  #allocation2 [shape = 'f32[8,4]{1,0:T(8,128)}', space=vmem, size = 0x1000, scoped, tag = 'scratch operand']
  #allocation3 [shape = 'f32[8,4]{1,0:T(8,128)}', space=vmem, size = 0x1000, scoped, tag = 'scratch operand']
  #allocation4 [shape = 'f32[8,32]{1,0:T(8,128)}', space=vmem, size = 0x1000, scoped, tag = 'scratch operand']
  %s0 = inlined_call_operand.vmem [shape: bf16[2,8,32], index: 0, kind: input, shape index: {}]
  %s1 = inlined_call_operand.vmem [shape: bf16[2,8,64], index: 1, kind: input, shape index: {}]
  %s2 = inlined_call_operand.vmem [shape: bf16[32,32], index: 2, kind: input, shape index: {}]
  %s3 = inlined_call_operand.vmem [shape: f32[1,32], index: 3, kind: input, shape index: {}]
  %s4 = inlined_call_operand.hbm [shape: f32[2,8,32], index: 4, kind: output, shape index: {}]
  %s5 = sld [smem:[#allocation0]]
  $region57: #{multi_headed_attention2.5} parent=0
    _
  %s7 = ssub.s32 1, %s5
  %s8 = scalar_select 0, %s7, %s5
  $region1: #{multi_headed_attention2.5} parent=0
    #allocation5 [shape = 'u8[8192]{0}', space=vmem, size = 0x2000, scoped, tag = 'output window, operand 0']
    #allocation6 [shape = 's32[2]{0}', space=sflag, size = 0x8, scoped, tag = 'scoped memory for multi_headed_attention2.5']
    %9 = vsyncpa [#allocation6], 0
    %s10 = scalar_lea.sflag [#allocation6], 1
    %11 = vsyncpa %s10, 0
    loop: start=0, step=1, limit=4
    $region2: #{multi_headed_attention2.5} parent=1 // loop_pre_header
      _
    $region3: #{multi_headed_attention2.5} parent=1 // loop_header
      %s13 = sphi 0, %s17
      %p14 = scmp.ge.s32.totalorder %s13, 4
      %s20 = sphi 0, %s39
      %s21 = sphi 0, %s35
      %s22 = sphi 0, %s31
      %s23 = sphi 0, %s20
      %s24 = sphi 0, %s21
      %s25 = sphi 0, %s22
      %s26 = sphi 0, %s23
      %s27 = sphi 0, %s24
      %s28 = sphi 0, %s25
      %s44 = sphi 0, %s46
      %s47 = sphi 0, %s44
      %s48 = sphi 0, %s47
      %s64 = sphi 0, %s48
      %s72 = sphi 0, %s74
      %s75 = sphi 0, %s72
      %s76 = sphi 0, %s75
      %s92 = sphi 0, %s76
      %s96 = sphi 0, %s96
      %s98 = sphi 0, %s96
      %s99 = sphi 0, %s98
      %s113 = sphi 0, %s99
      %s117 = sphi 0, %s117
      %s119 = sphi 0, %s117
      %s120 = sphi 0, %s119
      %s134 = sphi 0, %s120
      %s142 = sphi 0, %s144
      %s145 = sphi 0, %s142
      %s146 = sphi 0, %s145
      %s162 = sphi 0, %s146
    $region4: #{multi_headed_attention2.5} parent=1 // loop_header_branch
      %16 = sbr.rel (%p14) target = $region8
    $region5: #{multi_headed_attention2.5} parent=1 // loop_body
      %s18 = ssub.s32 %s13, 1
      %s19 = ssub.s32 %s13, 2
      %s29 = sadd.s32 1, %s22
      %p30 = scmp.ge.s32.totalorder %s29, 1
      %s31 = scalar_select %p30, 0, %s29
      %s32 = sadd.s32 1, %s21
      %s33 = scalar_select %p30, %s32, %s21
      %p34 = scmp.ge.s32.totalorder %s33, 1
      %s35 = scalar_select %p34, 0, %s33
      %s36 = sadd.s32 1, %s20
      %s37 = scalar_select %p34, %s36, %s20
      %p38 = scmp.ge.s32.totalorder %s37, 2
      %s39 = scalar_select %p38, 0, %s37
      %s40 = ssub.s32 %s20, %s39
      %s41 = ssub.s32 %s21, %s35
      %s42 = sor.u32 %s40, %s41
      %p43 = scmp.eq.s32.totalorder %s42, 0
      %s45 = sadd.s32 %s44, 1
      %s46 = scalar_select %p43, %s44, %s45
      %p49 = pneg %p43
      %p50 = scmp.eq.s32.totalorder %s13, 1
      %p51 = por %p49, %p50
      %p52 = scmp.ne.s32.totalorder %s44, %s47
      %p53 = scmp.eq.s32.totalorder %s13, 0
      %p54 = por %p52, %p53
      %p55 = scmp.ne.s32.totalorder %s44, %s47
      %p56 = scmp.eq.s32.totalorder %s18, 1
      %p57 = por %p55, %p56
      %p58 = scmp.ne.s32.totalorder %s47, %s48
      %p59 = scmp.eq.s32.totalorder %s18, 0
      %p60 = por %p58, %p59
      %p61 = scmp.ne.s32.totalorder %s47, %s48
      %p62 = scmp.eq.s32.totalorder %s19, 1
      %p63 = por %p61, %p62
      %p65 = scmp.ne.s32.totalorder %s48, %s64
      %p66 = scmp.eq.s32.totalorder %s19, 0
      %p67 = por %p65, %p66
      %s68 = ssub.s32 %s20, %s39
      %s69 = ssub.s32 %s22, %s31
      %s70 = sor.u32 %s68, %s69
      %p71 = scmp.eq.s32.totalorder %s70, 0
      %s73 = sadd.s32 %s72, 1
      %s74 = scalar_select %p71, %s72, %s73
      %p77 = pneg %p71
      %p78 = scmp.eq.s32.totalorder %s13, 1
      %p79 = por %p77, %p78
      %p80 = scmp.ne.s32.totalorder %s72, %s75
      %p81 = scmp.eq.s32.totalorder %s13, 0
      %p82 = por %p80, %p81
      %p83 = scmp.ne.s32.totalorder %s72, %s75
      %p84 = scmp.eq.s32.totalorder %s18, 1
      %p85 = por %p83, %p84
      %p86 = scmp.ne.s32.totalorder %s75, %s76
      %p87 = scmp.eq.s32.totalorder %s18, 0
      %p88 = por %p86, %p87
      %p89 = scmp.ne.s32.totalorder %s75, %s76
      %p90 = scmp.eq.s32.totalorder %s19, 1
      %p91 = por %p89, %p90
      %p93 = scmp.ne.s32.totalorder %s76, %s92
      %p94 = scmp.eq.s32.totalorder %s19, 0
      %p95 = por %p93, %p94
      %s97 = sadd.s32 %s96, 1
      %p100 = scmp.eq.s32.totalorder %s13, 1
      %p101 = scmp.ne.s32.totalorder %s96, %s98
      %p102 = scmp.eq.s32.totalorder %s13, 0
      %p103 = por %p101, %p102
      %p104 = scmp.ne.s32.totalorder %s96, %s98
      %p105 = scmp.eq.s32.totalorder %s18, 1
      %p106 = por %p104, %p105
      %p107 = scmp.ne.s32.totalorder %s98, %s99
      %p108 = scmp.eq.s32.totalorder %s18, 0
      %p109 = por %p107, %p108
      %p110 = scmp.ne.s32.totalorder %s98, %s99
      %p111 = scmp.eq.s32.totalorder %s19, 1
      %p112 = por %p110, %p111
      %p114 = scmp.ne.s32.totalorder %s99, %s113
      %p115 = scmp.eq.s32.totalorder %s19, 0
      %p116 = por %p114, %p115
      %s118 = sadd.s32 %s117, 1
      %p121 = scmp.eq.s32.totalorder %s13, 1
      %p122 = scmp.ne.s32.totalorder %s117, %s119
      %p123 = scmp.eq.s32.totalorder %s13, 0
      %p124 = por %p122, %p123
      %p125 = scmp.ne.s32.totalorder %s117, %s119
      %p126 = scmp.eq.s32.totalorder %s18, 1
      %p127 = por %p125, %p126
      %p128 = scmp.ne.s32.totalorder %s119, %s120
      %p129 = scmp.eq.s32.totalorder %s18, 0
      %p130 = por %p128, %p129
      %p131 = scmp.ne.s32.totalorder %s119, %s120
      %p132 = scmp.eq.s32.totalorder %s19, 1
      %p133 = por %p131, %p132
      %p135 = scmp.ne.s32.totalorder %s120, %s134
      %p136 = scmp.eq.s32.totalorder %s19, 0
      %p137 = por %p135, %p136
      %s138 = ssub.s32 %s20, %s39
      %s139 = ssub.s32 %s21, %s35
      %s140 = sor.u32 %s138, %s139
      %p141 = scmp.eq.s32.totalorder %s140, 0
      %s143 = sadd.s32 %s142, 1
      %s144 = scalar_select %p141, %s142, %s143
      %p147 = pneg %p141
      %p148 = scmp.eq.s32.totalorder %s13, 1
      %p149 = por %p147, %p148
      %p150 = scmp.ne.s32.totalorder %s142, %s145
      %p151 = scmp.eq.s32.totalorder %s13, 0
      %p152 = por %p150, %p151
      %p153 = scmp.ne.s32.totalorder %s142, %s145
      %p154 = scmp.eq.s32.totalorder %s18, 1
      %p155 = por %p153, %p154
      %p156 = scmp.ne.s32.totalorder %s145, %s146
      %p157 = scmp.eq.s32.totalorder %s18, 0
      %p158 = por %p156, %p157
      %p159 = scmp.ne.s32.totalorder %s145, %s146
      %p160 = scmp.eq.s32.totalorder %s19, 1
      %p161 = por %p159, %p160
      %p163 = scmp.ne.s32.totalorder %s146, %s162
      %p164 = scmp.eq.s32.totalorder %s19, 0
      %p165 = por %p163, %p164
      %p166 = scmp.le.s32.totalorder 1, %s13
      %p167 = scmp.lt.s32.totalorder %s13, 3
      %p168 = pnand %p166, %p167
      %p169 = pneg %p168
      // Predicated region
      $region9: #{multi_headed_attention2.5} parent=5 // pred_check
        _
      $region10: #{multi_headed_attention2.5} parent=5 // pred_check_branch
        %171 = sbr.rel (%p168) target = $region12
      $region11: #{multi_headed_attention2.5} parent=5 // pred_region
        %s172 = ssub.s32 %s13, 1
        // Predicated region
        $region13: #{multi_headed_attention2.5} parent=11 // pred_check
          %p173 = pneg %p109
        $region14: #{multi_headed_attention2.5} parent=11 // pred_check_branch
          %175 = sbr.rel (%p173) target = $region16
        $region15: #{multi_headed_attention2.5} parent=11 // pred_region
          _
        $region16: #{multi_headed_attention2.5} parent=11 // pred_fallthru
          _
        // Predicated region
        $region17: #{multi_headed_attention2.5} parent=11 // pred_check
          %p176 = pneg %p130
        $region18: #{multi_headed_attention2.5} parent=11 // pred_check_branch
          %178 = sbr.rel (%p176) target = $region20
        $region19: #{multi_headed_attention2.5} parent=11 // pred_region
          _
        $region20: #{multi_headed_attention2.5} parent=11 // pred_fallthru
          _
      $region12: #{multi_headed_attention2.5} parent=5 // pred_fallthru
        _
      %p179 = scmp.lt.s32.totalorder %s13, 2
      // Predicated region
      $region21: #{multi_headed_attention2.5} parent=5 // pred_check
        %p180 = pneg %p179
      $region22: #{multi_headed_attention2.5} parent=5 // pred_check_branch
        %182 = sbr.rel (%p180) target = $region24
      $region23: #{multi_headed_attention2.5} parent=5 // pred_region
        // Predicated region
        $region25: #{multi_headed_attention2.5} parent=23 // pred_check
          %p183 = pneg %p54
        $region26: #{multi_headed_attention2.5} parent=23 // pred_check_branch
          %185 = sbr.rel (%p183) target = $region28
        $region27: #{multi_headed_attention2.5} parent=23 // pred_region
          %p186 = scmp.lt.s32.totalorder %s20, 1
          %s187 = scalar_select %p186, %s20, 1
          %p188 = scmp.lt.s32.totalorder %s21, 0
          %s189 = scalar_select %p188, %s21, 0
          %s190 = sadd.s32 %s189, %s187
          %s191 = smul.addr %s190, 4
          %s192 = scalar_lea.vmem %s0, %s191
        $region28: #{multi_headed_attention2.5} parent=23 // pred_fallthru
          _
        // Predicated region
        $region29: #{multi_headed_attention2.5} parent=23 // pred_check
          %p193 = pneg %p82
        $region30: #{multi_headed_attention2.5} parent=23 // pred_check_branch
          %195 = sbr.rel (%p193) target = $region32
        $region31: #{multi_headed_attention2.5} parent=23 // pred_region
          %p196 = scmp.lt.s32.totalorder %s20, 1
          %s197 = scalar_select %p196, %s20, 1
          %p198 = scmp.lt.s32.totalorder %s22, 0
          %s199 = scalar_select %p198, %s22, 0
          %s200 = sadd.s32 %s199, %s197
          %s201 = smul.addr %s200, 4
          %s202 = scalar_lea.vmem %s1, %s201
        $region32: #{multi_headed_attention2.5} parent=23 // pred_fallthru
          _
      $region24: #{multi_headed_attention2.5} parent=5 // pred_fallthru
        _
      %p203 = scmp.le.s32.totalorder 1, %s13
      %p204 = scmp.lt.s32.totalorder %s13, 3
      %p205 = pnand %p203, %p204
      %p206 = pneg %p205
      // Predicated region
      $region33: #{multi_headed_attention2.5} parent=5 // pred_check
        _
      $region34: #{multi_headed_attention2.5} parent=5 // pred_check_branch
        %208 = sbr.rel (%p205) target = $region36
      $region35: #{multi_headed_attention2.5} parent=5 // pred_region
        %s209 = ssub.s32 %s13, 1
        %p210 = scmp.lt.s32.totalorder %s23, 1
        %s211 = scalar_select %p210, %s23, 1
        %p212 = scmp.lt.s32.totalorder %s24, 0
        %s213 = scalar_select %p212, %s24, 0
        %s214 = sadd.s32 %s213, %s211
        %s215 = smul.addr %s214, 4
        %s216 = scalar_lea.vmem %s0, %s215
        %p217 = pneg %p60
        %p218 = pneg %p57
        %p219 = scmp.lt.s32.totalorder %s23, 1
        %s220 = scalar_select %p219, %s23, 1
        %p221 = scmp.lt.s32.totalorder %s25, 0
        %s222 = scalar_select %p221, %s25, 0
        %s223 = sadd.s32 %s222, %s220
        %s224 = smul.addr %s223, 4
        %s225 = scalar_lea.vmem %s1, %s224
        %p226 = pneg %p88
        %p227 = pneg %p85
        %p228 = pneg %p109
        %p229 = pneg %p106
        %p230 = pneg %p130
        %p231 = pneg %p127
        %p232 = pneg %p158
        %p233 = pneg %p155
        %s234 = sand.u32 %s145, 1
        %s235 = scalar_lea.sflag [#allocation6], %s234
        %s236 = sand.u32 %s145, 1
        %s237 = smul.addr %s236, 8
        %s238 = scalar_lea.vmem [#allocation5], %s237
        %p239 = scmp.lt.s32.totalorder %s23, 1
        %s240 = scalar_select %p239, %s23, 1
        %p241 = scmp.lt.s32.totalorder %s24, 0
        %s242 = scalar_select %p241, %s24, 0
        %s243 = sadd.s32 %s242, %s240
        %s244 = smul.addr %s243, 4
        %s245 = scalar_lea.vmem %s0, %s244
        %p246 = scmp.lt.s32.totalorder %s23, 1
        %s247 = scalar_select %p246, %s23, 1
        %p248 = scmp.lt.s32.totalorder %s25, 0
        %s249 = scalar_select %p248, %s25, 0
        %s250 = sadd.s32 %s249, %s247
        %s251 = smul.addr %s250, 4
        %s252 = scalar_lea.vmem %s1, %s251
        %p254 = scmp.eq.s32.totalorder %s25, 0
        // Predicated region
        $region37: #{multi_headed_attention2.5} parent=35 // pred_check
          %p255 = pneg %p254
        $region38: #{multi_headed_attention2.5} parent=35 // pred_check_branch
          %257 = sbr.rel (%p255) target = $region40
        $region39: #{multi_headed_attention2.5} parent=35 // pred_region
          %vm258 = vcmask 31744
          %259 = vst.msk [vmem:[#allocation2] sm:$0xff] %vm258, -inf
          %260 = vst.msk [vmem:[#allocation3] sm:$0xff] %vm258, 0.0
          %vm261 = vcmask 261120
          %262 = vst.msk [vmem:[#allocation4] sm:$0xff] %vm261, 0.0
        $region40: #{multi_headed_attention2.5} parent=35 // pred_fallthru
          _
        %v263 = vld [vmem:[%s245] sm:$0xf]
        %v264 = vld [vmem:[%s252] sm:$0xf]
        %vm265 = vcmask 64512
        %v267 = vsel %vm265, %v263, 0
        %v270 = vsel %vm265, %v264, 0
        %272 = vmatpush.bf16.xpose.msra.mxu0 0
        %273 = vmatpush.bf16.xpose.msra.mxu0 0
        %274 = vmatpush.bf16.xpose.msra.mxu0 0
        %275 = vmatpush.bf16.xpose.msra.mxu0 0
        %276 = vmatpush.bf16.xpose.msra.mxu0 0
        %277 = vmatpush.bf16.xpose.msra.mxu0 0
        %278 = vmatpush.bf16.xpose.msra.mxu0 0
        %279 = vmatpush.bf16.xpose.msra.mxu0 %v270
        %280 = vmatmul.bf16.gmra.mxu0 %v267
        %v281 = vpop.f32.mrf.mxu0
        %v282 = vadd.f32 0.0, %v281
        %v283 = vpop.f32.mrf.mxu0
        %284 = vdwg.mxu0
        %v285 = vld [vmem:[#allocation2] sm:$0xff]
        %v286 = vsel %vm265, %v282, -inf
        %287 = vmax.xlane.f32.xlu0 %v286
        %v288 = vpop.xlane.xlu0 %287
        %v289 = vmax.f32 %v285, %v288
        %v290 = vsub.f32 %v285, %v289
        %v291 = vmul.f32 %v290, 1.442695
        %v292 = vpow.pop %v291
        %294 = vset.pattern.permute.xlu0 0
        %295 = vperm.xlu0 %294, %v289
        %v296 = vpop.permute.xlu0 %295
        %v298 = vsub.f32 %v282, %v296
        %v299 = vmul.f32 %v298, 1.442695
        %v300 = vpow.pop %v299
        %v301 = vsel %vm265, %v300, 0.0
        %302 = vadd.xlane.f32.xlu0 %v301
        %v303 = vpop.xlane.xlu0 %302
        %v304 = vld [vmem:[#allocation3] sm:$0xff]
        %v305 = vmul.f32 %v292, %v304
        %v306 = vadd.f32 %v305, %v303
        %vm307 = vcmask 7168
        %308 = vst.msk [vmem:[#allocation3] sm:$0xff] %vm307, %v306
        %v309 = vld [vmem:[#allocation4] sm:$0xff]
        %311 = vset.pattern.permute.xlu0 0
        %312 = vperm.xlu0 %311, %v292
        %v313 = vpop.permute.xlu0 %312
        %v315 = vmul.f32 %v313, %v309
        %v316 = vpack.c.bf16 %v300, %v300
        %v318 = vunpack.c.l.b16 %v264
        %v319 = vpack.c.b16 %v318, %v318
        %320 = vrot.lane.b32.xlu0 %v319, 96
        %v321 = vpop.permute.xlu0 %320
        %v323 = vsel %vm265, %v316, 0
        %vm325 = vcmask 1043456
        %v327 = vsel %vm325, %v321, 0
        %329 = vmatpush.bf16.msra.mxu0 0
        %330 = vmatpush.bf16.msra.mxu0 0
        %331 = vmatpush.bf16.msra.mxu0 0
        %332 = vmatpush.bf16.msra.mxu0 0
        %333 = vmatpush.bf16.msra.mxu0 0
        %334 = vmatpush.bf16.msra.mxu0 0
        %335 = vmatpush.bf16.msra.mxu0 0
        %336 = vmatpush.bf16.msra.mxu0 %v327
        %337 = vmatmul.bf16.gmra.mxu0 %v323
        %v338 = vpop.f32.mrf.mxu0
        %v339 = vadd.f32 0.0, %v338
        %v340 = vpop.f32.mrf.mxu0
        %341 = vdwg.mxu0
        %v342 = vadd.f32 %v315, %v339
        %343 = vst.msk [vmem:[#allocation4] sm:$0xff] %vm265, %v342
        %344 = vst.msk [vmem:[#allocation2] sm:$0xff] %vm307, %v289
        %v345 = vld [vmem:[%s245] sm:$0xf]
        %v346 = vld [vmem:[%s252] sm:$0xf]
        %v348 = vunpack.c.l.b16 %v345
        %v349 = vpack.c.b16 %v348, %v348
        %350 = vrot.lane.b32.xlu0 %v349, 120
        %v351 = vpop.permute.xlu0 %350
        %v353 = vunpack.c.l.b16 %v346
        %v354 = vpack.c.b16 %v353, %v353
        %355 = vrot.lane.b32.xlu0 %v354, 120
        %v356 = vpop.permute.xlu0 %355
        %v358 = vsel %vm265, %v351, 0
        %v361 = vsel %vm265, %v356, 0
        %363 = vmatpush.bf16.xpose.msra.mxu0 0
        %364 = vmatpush.bf16.xpose.msra.mxu0 0
        %365 = vmatpush.bf16.xpose.msra.mxu0 0
        %366 = vmatpush.bf16.xpose.msra.mxu0 0
        %367 = vmatpush.bf16.xpose.msra.mxu0 0
        %368 = vmatpush.bf16.xpose.msra.mxu0 0
        %369 = vmatpush.bf16.xpose.msra.mxu0 0
        %370 = vmatpush.bf16.xpose.msra.mxu0 %v361
        %371 = vmatmul.bf16.gmra.mxu0 %v358
        %v372 = vpop.f32.mrf.mxu0
        %v373 = vadd.f32 0.0, %v372
        %v374 = vpop.f32.mrf.mxu0
        %375 = vdwg.mxu0
        %v376 = vld [vmem:[#allocation2] sm:$0xff]
        %v377 = vsel %vm265, %v373, -inf
        %378 = vmax.xlane.f32.xlu0 %v377
        %v379 = vpop.xlane.xlu0 %378
        %v380 = vmax.f32 %v376, %v379
        %v381 = vsub.f32 %v376, %v380
        %v382 = vmul.f32 %v381, 1.442695
        %v383 = vpow.pop %v382
        %385 = vset.pattern.permute.xlu0 1
        %386 = vperm.xlu0 %385, %v380
        %v387 = vpop.permute.xlu0 %386
        %v389 = vsub.f32 %v373, %v387
        %v390 = vmul.f32 %v389, 1.442695
        %v391 = vpow.pop %v390
        %v392 = vsel %vm265, %v391, 0.0
        %393 = vadd.xlane.f32.xlu0 %v392
        %v394 = vpop.xlane.xlu0 %393
        %v395 = vld [vmem:[#allocation3] sm:$0xff]
        %v396 = vmul.f32 %v383, %v395
        %v397 = vadd.f32 %v396, %v394
        %vm398 = vcmask 15368
        %399 = vst.msk [vmem:[#allocation3] sm:$0xff] %vm398, %v397
        %v400 = vld [vmem:[#allocation4] sm:$0xff]
        %402 = vset.pattern.permute.xlu0 1
        %403 = vperm.xlu0 %402, %v383
        %v404 = vpop.permute.xlu0 %403
        %v406 = vmul.f32 %v404, %v400
        %v407 = vpack.c.bf16 %v391, %v391
        %408 = vrot.lane.b32.xlu0 %v354, 88
        %v409 = vpop.permute.xlu0 %408
        %v411 = vsel %vm265, %v407, 0
        %v414 = vsel %vm325, %v409, 0
        %416 = vmatpush.bf16.msra.mxu0 0
        %417 = vmatpush.bf16.msra.mxu0 0
        %418 = vmatpush.bf16.msra.mxu0 0
        %419 = vmatpush.bf16.msra.mxu0 0
        %420 = vmatpush.bf16.msra.mxu0 0
        %421 = vmatpush.bf16.msra.mxu0 0
        %422 = vmatpush.bf16.msra.mxu0 0
        %423 = vmatpush.bf16.msra.mxu0 %v414
        %424 = vmatmul.bf16.gmra.mxu0 %v411
        %v425 = vpop.f32.mrf.mxu0
        %v426 = vadd.f32 0.0, %v425
        %v427 = vpop.f32.mrf.mxu0
        %428 = vdwg.mxu0
        %430 = vrot.lane.b32.xlu0 %v426, 8
        %v431 = vpop.permute.xlu0 %430
        %v433 = vadd.f32 %v406, %v431
        %vm434 = vcmask 130112
        %435 = vst.msk [vmem:[#allocation4] sm:$0xff] %vm434, %v433
        %436 = vst.msk [vmem:[#allocation2] sm:$0xff] %vm398, %v380
        %v437 = vld [vmem:[%s245] sm:$0xf]
        %v438 = vld [vmem:[%s252] sm:$0xf]
        %v440 = vunpack.c.l.b16 %v437
        %v441 = vpack.c.b16 %v440, %v440
        %442 = vrot.lane.b32.xlu0 %v441, 112
        %v443 = vpop.permute.xlu0 %442
        %v445 = vunpack.c.l.b16 %v438
        %v446 = vpack.c.b16 %v445, %v445
        %447 = vrot.lane.b32.xlu0 %v446, 112
        %v448 = vpop.permute.xlu0 %447
        %v450 = vsel %vm265, %v443, 0
        %v453 = vsel %vm265, %v448, 0
        %455 = vmatpush.bf16.xpose.msra.mxu0 0
        %456 = vmatpush.bf16.xpose.msra.mxu0 0
        %457 = vmatpush.bf16.xpose.msra.mxu0 0
        %458 = vmatpush.bf16.xpose.msra.mxu0 0
        %459 = vmatpush.bf16.xpose.msra.mxu0 0
        %460 = vmatpush.bf16.xpose.msra.mxu0 0
        %461 = vmatpush.bf16.xpose.msra.mxu0 0
        %462 = vmatpush.bf16.xpose.msra.mxu0 %v453
        %463 = vmatmul.bf16.gmra.mxu0 %v450
        %v464 = vpop.f32.mrf.mxu0
        %v465 = vadd.f32 0.0, %v464
        %v466 = vpop.f32.mrf.mxu0
        %467 = vdwg.mxu0
        %v468 = vld [vmem:[#allocation2] sm:$0xff]
        %v469 = vsel %vm265, %v465, -inf
        %470 = vmax.xlane.f32.xlu0 %v469
        %v471 = vpop.xlane.xlu0 %470
        %v472 = vmax.f32 %v468, %v471
        %v473 = vsub.f32 %v468, %v472
        %v474 = vmul.f32 %v473, 1.442695
        %v475 = vpow.pop %v474
        %477 = vset.pattern.permute.xlu0 2
        %478 = vperm.xlu0 %477, %v472
        %v479 = vpop.permute.xlu0 %478
        %v481 = vsub.f32 %v465, %v479
        %v482 = vmul.f32 %v481, 1.442695
        %v483 = vpow.pop %v482
        %v484 = vsel %vm265, %v483, 0.0
        %485 = vadd.xlane.f32.xlu0 %v484
        %v486 = vpop.xlane.xlu0 %485
        %v487 = vld [vmem:[#allocation3] sm:$0xff]
        %v488 = vmul.f32 %v475, %v487
        %v489 = vadd.f32 %v488, %v486
        %vm490 = vcmask 23568
        %491 = vst.msk [vmem:[#allocation3] sm:$0xff] %vm490, %v489
        %v492 = vld [vmem:[#allocation4] sm:$0xff]
        %494 = vset.pattern.permute.xlu0 2
        %495 = vperm.xlu0 %494, %v475
        %v496 = vpop.permute.xlu0 %495
        %v498 = vmul.f32 %v496, %v492
        %v499 = vpack.c.bf16 %v483, %v483
        %500 = vrot.lane.b32.xlu0 %v446, 80
        %v501 = vpop.permute.xlu0 %500
        %v503 = vsel %vm265, %v499, 0
        %v506 = vsel %vm325, %v501, 0
        %508 = vmatpush.bf16.msra.mxu0 0
        %509 = vmatpush.bf16.msra.mxu0 0
        %510 = vmatpush.bf16.msra.mxu0 0
        %511 = vmatpush.bf16.msra.mxu0 0
        %512 = vmatpush.bf16.msra.mxu0 0
        %513 = vmatpush.bf16.msra.mxu0 0
        %514 = vmatpush.bf16.msra.mxu0 0
        %515 = vmatpush.bf16.msra.mxu0 %v506
        %516 = vmatmul.bf16.gmra.mxu0 %v503
        %v517 = vpop.f32.mrf.mxu0
        %v518 = vadd.f32 0.0, %v517
        %v519 = vpop.f32.mrf.mxu0
        %520 = vdwg.mxu0
        %522 = vrot.lane.b32.xlu0 %v518, 16
        %v523 = vpop.permute.xlu0 %522
        %v525 = vadd.f32 %v498, %v523
        %vm526 = vcmask 195712
        %527 = vst.msk [vmem:[#allocation4] sm:$0xff] %vm526, %v525
        %528 = vst.msk [vmem:[#allocation2] sm:$0xff] %vm490, %v472
        %v529 = vld [vmem:[%s245] sm:$0xf]
        %v530 = vld [vmem:[%s252] sm:$0xf]
        %v532 = vunpack.c.l.b16 %v529
        %v533 = vpack.c.b16 %v532, %v532
        %534 = vrot.lane.b32.xlu0 %v533, 104
        %v535 = vpop.permute.xlu0 %534
        %v537 = vunpack.c.l.b16 %v530
        %v538 = vpack.c.b16 %v537, %v537
        %539 = vrot.lane.b32.xlu0 %v538, 104
        %v540 = vpop.permute.xlu0 %539
        %v542 = vsel %vm265, %v535, 0
        %v545 = vsel %vm265, %v540, 0
        %547 = vmatpush.bf16.xpose.msra.mxu0 0
        %548 = vmatpush.bf16.xpose.msra.mxu0 0
        %549 = vmatpush.bf16.xpose.msra.mxu0 0
        %550 = vmatpush.bf16.xpose.msra.mxu0 0
        %551 = vmatpush.bf16.xpose.msra.mxu0 0
        %552 = vmatpush.bf16.xpose.msra.mxu0 0
        %553 = vmatpush.bf16.xpose.msra.mxu0 0
        %554 = vmatpush.bf16.xpose.msra.mxu0 %v545
        %555 = vmatmul.bf16.gmra.mxu0 %v542
        %v556 = vpop.f32.mrf.mxu0
        %v557 = vadd.f32 0.0, %v556
        %v558 = vpop.f32.mrf.mxu0
        %559 = vdwg.mxu0
        %v560 = vld [vmem:[#allocation2] sm:$0xff]
        %v561 = vsel %vm265, %v557, -inf
        %562 = vmax.xlane.f32.xlu0 %v561
        %v563 = vpop.xlane.xlu0 %562
        %v564 = vmax.f32 %v560, %v563
        %v565 = vsub.f32 %v560, %v564
        %v566 = vmul.f32 %v565, 1.442695
        %v567 = vpow.pop %v566
        %569 = vset.pattern.permute.xlu0 3
        %570 = vperm.xlu0 %569, %v564
        %v571 = vpop.permute.xlu0 %570
        %v573 = vsub.f32 %v557, %v571
        %v574 = vmul.f32 %v573, 1.442695
        %v575 = vpow.pop %v574
        %v576 = vsel %vm265, %v575, 0.0
        %577 = vadd.xlane.f32.xlu0 %v576
        %v578 = vpop.xlane.xlu0 %577
        %v579 = vld [vmem:[#allocation3] sm:$0xff]
        %v580 = vmul.f32 %v567, %v579
        %v581 = vadd.f32 %v580, %v578
        %vm582 = vcmask 31768
        %583 = vst.msk [vmem:[#allocation3] sm:$0xff] %vm582, %v581
        %v584 = vld [vmem:[#allocation4] sm:$0xff]
        %586 = vset.pattern.permute.xlu0 3
        %587 = vperm.xlu0 %586, %v567
        %v588 = vpop.permute.xlu0 %587
        %v590 = vmul.f32 %v588, %v584
        %v591 = vpack.c.bf16 %v575, %v575
        %592 = vrot.lane.b32.xlu0 %v538, 72
        %v593 = vpop.permute.xlu0 %592
        %v595 = vsel %vm265, %v591, 0
        %v598 = vsel %vm325, %v593, 0
        %600 = vmatpush.bf16.msra.mxu0 0
        %601 = vmatpush.bf16.msra.mxu0 0
        %602 = vmatpush.bf16.msra.mxu0 0
        %603 = vmatpush.bf16.msra.mxu0 0
        %604 = vmatpush.bf16.msra.mxu0 0
        %605 = vmatpush.bf16.msra.mxu0 0
        %606 = vmatpush.bf16.msra.mxu0 0
        %607 = vmatpush.bf16.msra.mxu0 %v598
        %608 = vmatmul.bf16.gmra.mxu0 %v595
        %v609 = vpop.f32.mrf.mxu0
        %v610 = vadd.f32 0.0, %v609
        %v611 = vpop.f32.mrf.mxu0
        %612 = vdwg.mxu0
        %614 = vrot.lane.b32.xlu0 %v610, 24
        %v615 = vpop.permute.xlu0 %614
        %v617 = vadd.f32 %v590, %v615
        %vm618 = vcmask 261312
        %619 = vst.msk [vmem:[#allocation4] sm:$0xff] %vm618, %v617
        %620 = vst.msk [vmem:[#allocation2] sm:$0xff] %vm582, %v564
        // Predicated region
        $region41: #{multi_headed_attention2.5} parent=35 // pred_check
          %p621 = pneg %p254
        $region42: #{multi_headed_attention2.5} parent=35 // pred_check_branch
          %623 = sbr.rel (%p621) target = $region44
        $region43: #{multi_headed_attention2.5} parent=35 // pred_region
          %v624 = vld [vmem:[#allocation4] sm:$0xff]
          %v625 = vld [vmem:[#allocation3] sm:$0xff]
          %v626 = vrcp.pop %v625
          %628 = vset.pattern.permute.xlu0 0
          %629 = vperm.xlu0 %628, %v626
          %v630 = vpop.permute.xlu0 %629
          %v632 = vmul.f32 %v624, %v630
          %633 = vst.msk [vmem:[#allocation4] sm:$0xff] %vm265, %v632
          %v634 = vld [vmem:[#allocation4] sm:$0xff]
          %v635 = vld [vmem:[#allocation3] sm:$0xff]
          %v636 = vrcp.pop %v635
          %638 = vset.pattern.permute.xlu0 1
          %639 = vperm.xlu0 %638, %v636
          %v640 = vpop.permute.xlu0 %639
          %v642 = vmul.f32 %v634, %v640
          %643 = vst.msk [vmem:[#allocation4] sm:$0xff] %vm434, %v642
          %v644 = vld [vmem:[#allocation4] sm:$0xff]
          %v645 = vld [vmem:[#allocation3] sm:$0xff]
          %v646 = vrcp.pop %v645
          %648 = vset.pattern.permute.xlu0 2
          %649 = vperm.xlu0 %648, %v646
          %v650 = vpop.permute.xlu0 %649
          %v652 = vmul.f32 %v644, %v650
          %653 = vst.msk [vmem:[#allocation4] sm:$0xff] %vm526, %v652
          %v654 = vld [vmem:[#allocation4] sm:$0xff]
          %v655 = vld [vmem:[#allocation3] sm:$0xff]
          %v656 = vrcp.pop %v655
          %658 = vset.pattern.permute.xlu0 3
          %659 = vperm.xlu0 %658, %v656
          %v660 = vpop.permute.xlu0 %659
          %v662 = vmul.f32 %v654, %v660
          %663 = vst.msk [vmem:[#allocation4] sm:$0xff] %vm618, %v662
          %v664 = vld [vmem:[#allocation4] sm:$0xff]
          %v665 = vpack.c.bf16 %v664, %v664
          %v666 = vld [vmem:[%s2] sm:$0xf]
          %v667 = vld [vmem:[%s2 + $0x4] sm:$0xf]
          %v668 = vld [vmem:[%s2 + $0x8] sm:$0xf]
          %v669 = vld [vmem:[%s2 + $0xc] sm:$0xf]
          %v670 = vld [vmem:[%s3] sm:$0x1]
          %v672 = vperm.slane %v670, 0
          %v678 = vunpack.c.l.b16 %v666
          %v679 = vunpack.c.l.b16 %v667
          %v680 = vunpack.c.l.b16 %v668
          %v681 = vunpack.c.l.b16 %v669
          %v682 = vpack.c.b16 %v679, %v678
          %v683 = vpack.c.b16 %v681, %v680
          %vm686 = vcmask 261120
          %v688 = vsel %vm686, %v665, 0
          %690 = vmatpush.bf16.msra.mxu0 0
          %691 = vmatpush.bf16.msra.mxu0 0
          %692 = vmatpush.bf16.msra.mxu0 0
          %693 = vmatpush.bf16.msra.mxu0 0
          %694 = vmatpush.bf16.msra.mxu0 0
          %695 = vmatpush.bf16.msra.mxu0 0
          %696 = vmatpush.bf16.msra.mxu0 %v683
          %697 = vmatpush.bf16.msra.mxu0 %v682
          %698 = vmatmul.bf16.gmra.mxu0 %v688
          %v699 = vpop.f32.mrf.mxu0
          %v700 = vadd.f32 %v672, %v699
          %v701 = vpop.f32.mrf.mxu0
          %702 = vdwg.mxu0
          %703 = vst.msk [vmem:[%s238] sm:$0xff] %vm686, %v700
        $region44: #{multi_headed_attention2.5} parent=35 // pred_fallthru
          _
        %s704 = sand.u32 %s145, 1
        %s705 = scalar_lea.sflag [#allocation6], %s704
        %s706 = sand.u32 %s145, 1
        %s707 = smul.addr %s706, 8
        %s708 = scalar_lea.vmem [#allocation5], %s707
        // Predicated region
        $region45: #{multi_headed_attention2.5} parent=35 // pred_check
          %p709 = pneg %p155
        $region46: #{multi_headed_attention2.5} parent=35 // pred_check_branch
          %711 = sbr.rel (%p709) target = $region48
        $region47: #{multi_headed_attention2.5} parent=35 // pred_region
          %713 = vsyncadd %s705, 0
          %s714 = sadd.s32 %s24, %s23
          %s715 = smul.addr %s714, 8
          %s716 = scalar_lea.hbm %s4, %s715
          %s718 = sshll.u32 %s708, 4
          %s719 = int_to_ptr.vmem [resolvable:$true] %s718
          %s720 = sshll.u32 %s716, 4
          %s721 = int_to_ptr.hbm [resolvable:$true] %s720
          %723 = dma.vmem_to_hbm [thread:$0]  %s719, 128, %s721, %s705
        $region48: #{multi_headed_attention2.5} parent=35 // pred_fallthru
          _
      $region36: #{multi_headed_attention2.5} parent=5 // pred_fallthru
        _
      %p724 = scmp.le.s32.totalorder 2, %s13
      // Predicated region
      $region49: #{multi_headed_attention2.5} parent=5 // pred_check
        %p725 = pneg %p724
      $region50: #{multi_headed_attention2.5} parent=5 // pred_check_branch
        %727 = sbr.rel (%p725) target = $region52
      $region51: #{multi_headed_attention2.5} parent=5 // pred_region
        %s728 = ssub.s32 %s13, 2
        // Predicated region
        $region53: #{multi_headed_attention2.5} parent=51 // pred_check
          %p729 = pneg %p161
        $region54: #{multi_headed_attention2.5} parent=51 // pred_check_branch
          %731 = sbr.rel (%p729) target = $region56
        $region55: #{multi_headed_attention2.5} parent=51 // pred_region
          %s732 = sand.u32 %s146, 1
          %s733 = scalar_lea.sflag [#allocation6], %s732
          %s734 = sand.u32 %s146, 1
          %s735 = smul.addr %s734, 8
          %s736 = scalar_lea.vmem [#allocation5], %s735
          %738 = dma.done %s733, 128
        $region56: #{multi_headed_attention2.5} parent=51 // pred_fallthru
          _
      $region52: #{multi_headed_attention2.5} parent=5 // pred_fallthru
        _
    $region6: #{multi_headed_attention2.5} parent=1 // loop_footer
      %s17 = sadd.s32 1, %s13
    $region7: #{multi_headed_attention2.5} parent=1 // loop_footer_branch
      %12 = sbr.rel target = $region3
    $region8: #{multi_headed_attention2.5} parent=1 // loop_exit
      _
    %739 = vsyncpa [#allocation6], 1
    %s740 = scalar_lea.sflag [#allocation6], 1
    %741 = vsyncpa %s740, 1

</llo_original>
